<compile_context>
chip_gen: v7x
topology: tpu7x:2x2x1
jax: 0.10.0
libtpu: 0.0.40
codegen_flags: <defaults>
</compile_context>

<pallas_src>
import functools

import jax
import jax.numpy as jnp
from jax import lax
from jax.experimental import pallas as pl
from jax.experimental.pallas import tpu as pltpu


LANE = 128            # padded lane (channel/contraction) width
B_PAD = 8             # batch rows per tile (innermost row index)
H_PAD = 8             # padded spatial height
W_PAD = 8             # padded spatial width

TAPS = ((0, 0), (0, 1), (1, 0), (1, 1))            # k = dh*2 + dw
OFFS = tuple(dh * 64 + dw * 8 for dh, dw in TAPS)  # row offsets (0, 8, 64, 72)

# Rows produced per layer.  Chosen so every row a later stage reads is in
# range (multiples of 8):
R3 = 224   # conv3: FC reads rows h*64+w*8+b, h,w in [0,4) -> max 223
R2 = 296   # conv2: conv3 operand reads rows r + {0,8,64,72}, r < 224 -> max 295
R1 = 368   # conv1: conv2 operand reads rows r + {0,8,64,72}, r < 296 -> max 367

assert R3 >= 3 * 64 + 3 * 8 + B_PAD
assert R2 >= R3 + max(OFFS)
assert R1 >= R2 + max(OFFS)


# ----------------------------- Pallas kernel -------------------------------


def _fused_forward_kernel(obs_ref, w1_ref, b1_ref, w2_ref, b2_ref,
                          w3_ref, b3_ref, wf_ref, bf_ref, wh_ref, bh_ref,
                          out_ref):
    lane = lax.broadcasted_iota(jnp.int32, (1, LANE), 1)
    half = lane < 64

    def relu_bias(acc, b_ref):
        return jnp.maximum(acc + b_ref[...], 0.0)

    def shift(x, off, rows):
        # Sublane-aligned row-shifted window of an f32 value (off % 8 == 0).
        return lax.slice(x, (off, 0), (off + rows, x.shape[1]))

    # conv1: taps pre-packed into lane quarters by the wrapper -> one dot.
    x0 = obs_ref[0]                                              # [368,128] bf16
    x1 = relu_bias(jnp.dot(x0, w1_ref[...],
                           preferred_element_type=jnp.float32),
                   b1_ref)                                       # [368,128] f32
    # x1 lanes: conv1's 32 output channels duplicated in all 4 quarters.

    # conv2: K = 4 taps x 32 ch = 128.  Operand = per-quarter select of four
    # row-shifted copies (channels already sit in every quarter of x1).
    s0, s1, s2, s3 = [shift(x1, o, R2) for o in OFFS]
    op2 = jnp.where(lane < 32, s0,
          jnp.where(lane < 64, s1,
          jnp.where(lane < 96, s2, s3))).astype(jnp.bfloat16)    # [296,128]
    x2 = relu_bias(jnp.dot(op2, w2_ref[...],
                           preferred_element_type=jnp.float32),
                   b2_ref)                                       # [296,128] f32
    # x2 lanes: conv2's 64 output channels duplicated in both halves.

    # conv3: K = 4 taps x 64 ch = 256 (native depth for v6e/v7x MXU).
    t0, t1, t2, t3 = [shift(x2, o, R3) for o in OFFS]
    op3 = jnp.concatenate([jnp.where(half, t0, t1),
                           jnp.where(half, t2, t3)],
                          axis=1).astype(jnp.bfloat16)           # [224,256]
    x3 = relu_bias(jnp.dot(op3, w3_ref[...],
                           preferred_element_type=jnp.float32),
                   b3_ref)                                       # [224,128] f32
    # x3 lanes: conv3's 64 output channels duplicated in both halves.

    # FC: un-padded K = 1024.  Pack the 16 valid spatial positions pairwise
    # into 8 lane-dense [8,128] blocks (NCHW-flatten perm folded into wf).
    blocks = []
    for q in range(8):
        p0, p1 = 2 * q, 2 * q + 1
        r0 = (p0 // 4) * 64 + (p0 % 4) * 8
        r1 = (p1 // 4) * 64 + (p1 % 4) * 8
        blocks.append(jnp.where(half, shift(x3, r0, B_PAD),
                                shift(x3, r1, B_PAD)))
    hfc = jnp.concatenate(blocks, axis=1).astype(jnp.bfloat16)   # [8,1024]

    h1 = relu_bias(jnp.dot(hfc, wf_ref[...],
                           preferred_element_type=jnp.float32),
                   bf_ref)                                       # [8,128] f32

    # Merged policy + value heads, lane-dense output.
    out = jnp.dot(h1.astype(jnp.bfloat16), wh_ref[...],
                  preferred_element_type=jnp.float32)
    out_ref[0] = out + bh_ref[...]                               # [8,128]


# ------------------------- parameter preparation ---------------------------


def prepare_params(params, num_outputs):
    """One-time repack: tap-packed bf16 conv weights with duplicated output
    channels, un-padded FC weight with the NCHW flatten folded in, merged
    policy/value head.  Biases stay f32."""
    assert num_outputs + 1 <= LANE, "value lane must fit next to policy lanes"

    # conv1: rows = tap k * 32 + in-ch c (3 real); cols = out ch duplicated x4.
    w1, b1 = params["w1"], params["b1"]                  # [2,2,3,32], [32]
    w1p = jnp.zeros((LANE, LANE), jnp.float32)
    b1p = jnp.zeros((1, LANE), jnp.float32)
    for k, (dh, dw) in enumerate(TAPS):
        for q in range(4):
            w1p = w1p.at[k * 32:k * 32 + 3, q * 32:(q + 1) * 32].set(w1[dh, dw])
    for q in range(4):
        b1p = b1p.at[0, q * 32:(q + 1) * 32].set(b1)

    # conv2: rows = tap k * 32 + in-ch c (32 real); cols = out ch duplicated x2.
    w2, b2 = params["w2"], params["b2"]                  # [2,2,32,64], [64]
    w2p = jnp.zeros((LANE, LANE), jnp.float32)
    b2p = jnp.zeros((1, LANE), jnp.float32)
    for k, (dh, dw) in enumerate(TAPS):
        for s in range(2):
            w2p = w2p.at[k * 32:(k + 1) * 32, s * 64:(s + 1) * 64].set(w2[dh, dw])
    for s in range(2):
        b2p = b2p.at[0, s * 64:(s + 1) * 64].set(b2)

    # conv3: K=256, rows = tap k * 64 + in-ch c; cols = out ch duplicated x2.
    w3, b3 = params["w3"], params["b3"]                  # [2,2,64,64], [64]
    w3p = jnp.zeros((2 * LANE, LANE), jnp.float32)
    b3p = jnp.zeros((1, LANE), jnp.float32)
    for k, (dh, dw) in enumerate(TAPS):
        for s in range(2):
            w3p = w3p.at[k * 64:(k + 1) * 64, s * 64:(s + 1) * 64].set(w3[dh, dw])
    for s in range(2):
        b3p = b3p.at[0, s * 64:(s + 1) * 64].set(b3)

    # FC: PyTorch NCHW flatten row index = c*16 + p, p = h*4 + w.  Kernel
    # block q holds positions (2q, 2q+1) at lane halves, channels within.
    wf = params["wf"]                                    # [1024, 64]
    wf3 = jnp.transpose(wf.reshape(64, 16, 64), (1, 0, 2))   # [p, c, out]
    wfp = jnp.zeros((8, 2, 64, LANE), jnp.float32)
    wfp = wfp.at[:, :, :, :64].set(wf3.reshape(8, 2, 64, 64))
    wfp = wfp.reshape(8 * LANE, LANE)                    # [1024, 128]
    bfp = jnp.zeros((1, LANE), jnp.float32).at[0, :64].set(params["bf"])

    # Merged policy/value head: cols [0, P) = policy, col P = value.
    whp = jnp.zeros((LANE, LANE), jnp.float32)
    whp = whp.at[:64, :num_outputs].set(params["wp"])
    whp = whp.at[:64, num_outputs:num_outputs + 1].set(params["wv"])
    bhp = jnp.zeros((1, LANE), jnp.float32)
    bhp = bhp.at[0, :num_outputs].set(params["bp"])
    bhp = bhp.at[0, num_outputs].set(params["bv"][0])

    bf16 = lambda a: a.astype(jnp.bfloat16)
    return dict(w1=bf16(w1p), b1=b1p, w2=bf16(w2p), b2=b2p,
                w3=bf16(w3p), b3=b3p, wf=bf16(wfp), bf=bfp,
                wh=bf16(whp), bh=bhp)


# ------------------------------ forward pass --------------------------------


def pursuit_forward(obs, prepped, *, num_outputs):
    """obs: NHWC [B, 7, 7, 3].  Returns (policy_logits [B, P], value [B])."""
    B = obs.shape[0]
    assert obs.shape[1:] == (7, 7, 3)
    assert num_outputs + 1 <= LANE
    n_tiles = -(-B // B_PAD)
    Bp = n_tiles * B_PAD

    # Tap-packed, zero-padded obs in the kernel's row layout, per batch tile:
    # row = h*64 + w*8 + b_in_tile, lane = tap_k*32 + channel, bf16.
    obs_t = jnp.transpose(obs.astype(jnp.float32), (1, 2, 0, 3))   # [7,7,B,3]
    obs_grid = jnp.zeros((H_PAD, W_PAD, Bp, LANE), jnp.float32)
    for k, (dh, dw) in enumerate(TAPS):
        obs_grid = obs_grid.at[:7 - dh, :7 - dw, :B, k * 32:k * 32 + 3].set(
            obs_t[dh:, dw:, :, :])
    obs_grid = obs_grid.reshape(H_PAD, W_PAD, n_tiles, B_PAD, LANE)
    obs_grid = jnp.transpose(obs_grid, (2, 0, 1, 3, 4))
    obs_packed = obs_grid.reshape(n_tiles, H_PAD * W_PAD * B_PAD, LANE)
    obs_packed = obs_packed[:, :R1, :].astype(jnp.bfloat16)

    args = (obs_packed,
            prepped["w1"], prepped["b1"],
            prepped["w2"], prepped["b2"],
            prepped["w3"], prepped["b3"],
            prepped["wf"], prepped["bf"],
            prepped["wh"], prepped["bh"])

    def tile_spec(shape):
        zeros = (0,) * (len(shape) - 1)
        return pl.BlockSpec((1,) + tuple(shape[1:]), lambda t: (t,) + zeros)

    def const_spec(shape):
        zeros = (0,) * len(shape)
        return pl.BlockSpec(tuple(shape), lambda t: zeros)

    flops_per_tile = 2 * (R1 * 128 * 128 + R2 * 128 * 128 + R3 * 256 * 128
                          + B_PAD * 1024 * 128 + B_PAD * 128 * 128)
    bytes_accessed = int(sum(a.size * a.dtype.itemsize for a in args)
                         + n_tiles * B_PAD * LANE * 4)

    out = pl.pallas_call(
        _fused_forward_kernel,
        out_shape=jax.ShapeDtypeStruct((n_tiles, B_PAD, LANE), jnp.float32),
        grid_spec=pltpu.PrefetchScalarGridSpec(
            num_scalar_prefetch=0,
            grid=(n_tiles,),
            in_specs=[tile_spec(obs_packed.shape)]
                     + [const_spec(a.shape) for a in args[1:]],
            out_specs=tile_spec((n_tiles, B_PAD, LANE)),
        ),
        compiler_params=pltpu.CompilerParams(
            dimension_semantics=("parallel",)),
        cost_estimate=pl.CostEstimate(
            flops=flops_per_tile * n_tiles,
            transcendentals=0,
            bytes_accessed=bytes_accessed),
    )(*args)

    out = out.reshape(n_tiles * B_PAD, LANE)[:B]
    pol = out[:, :num_outputs]
    val = out[:, num_outputs]            # value_function() -> flattened [B]
    return pol, val


# ------------------------------- reference ----------------------------------


def pursuit_reference(obs, params):
    """Pure-JAX f32 reference (same math as the PyTorch module)."""
    x = obs
    for w, b in ((params["w1"], params["b1"]),
                 (params["w2"], params["b2"]),
                 (params["w3"], params["b3"])):
        x = lax.conv_general_dilated(
            x, w, window_strides=(1, 1), padding="VALID",
            dimension_numbers=("NHWC", "HWIO", "NHWC")) + b
        x = jnp.maximum(x, 0.0)
    h = jnp.transpose(x, (0, 3, 1, 2)).reshape(obs.shape[0], -1)  # NCHW flatten
    h = jnp.maximum(h @ params["wf"] + params["bf"], 0.0)
    pol = h @ params["wp"] + params["bp"]
    val = (h @ params["wv"] + params["bv"]).reshape(-1)
    return pol, val


# --------------------------------- main --------------------------------------


if __name__ == "__main__":
    key = jax.random.PRNGKey(0)
    ks = jax.random.split(key, 13)

    # Pursuit obs is 7x7x3 (so flatten size == 1024); B=11 exercises the
    # batch-tiled grid (2 tiles, partial last tile).
    B, H, W, C = 11, 7, 7, 3
    num_outputs = 5

    def init(k, shape, scale=0.1):
        return scale * jax.random.normal(k, shape, jnp.float32)

    params = dict(
        w1=init(ks[0], (2, 2, 3, 32)),     b1=init(ks[1], (32,)),
        w2=init(ks[2], (2, 2, 32, 64)),    b2=init(ks[3], (64,)),
        w3=init(ks[4], (2, 2, 64, 64)),    b3=init(ks[5], (64,)),
        wf=init(ks[6], (1024, 64), 0.03),  bf=init(ks[7], (64,)),
        wp=init(ks[8], (64, num_outputs)), bp=init(ks[9], (num_outputs,)),
        wv=init(ks[10], (64, 1)),          bv=init(ks[11], (1,)),
    )

    obs = jax.random.uniform(ks[12], (B, H, W, C), jnp.float32)

    prepped = prepare_params(params, num_outputs)
    fwd = jax.jit(functools.partial(pursuit_forward, num_outputs=num_outputs))

    pol, val = fwd(obs, prepped)
    jax.block_until_ready((pol, val))

    rpol, rval = pursuit_reference(obs, params)

    assert pol.shape == (B, num_outputs), pol.shape
    assert val.shape == (B,), val.shape
    # bf16 MXU operands (f32 accumulation) -> relaxed tolerance vs f32 ref.
    assert jnp.allclose(pol, rpol, atol=2e-2, rtol=2e-2)
    assert jnp.allclose(val, rval, atol=2e-2, rtol=2e-2)

    print("KERNEL_OK")
</pallas_src>

<mosaic_0001>
module attributes {stable_mosaic.version = 11 : i64} {
  func.func @_fused_forward_kernel(%arg0: i32, %arg1: memref<1x368x128xbf16, #tpu.memory_space<vmem>>, %arg2: memref<128x128xbf16, #tpu.memory_space<vmem>>, %arg3: memref<1x128xf32, #tpu.memory_space<vmem>>, %arg4: memref<128x128xbf16, #tpu.memory_space<vmem>>, %arg5: memref<1x128xf32, #tpu.memory_space<vmem>>, %arg6: memref<256x128xbf16, #tpu.memory_space<vmem>>, %arg7: memref<1x128xf32, #tpu.memory_space<vmem>>, %arg8: memref<1024x128xbf16, #tpu.memory_space<vmem>>, %arg9: memref<1x128xf32, #tpu.memory_space<vmem>>, %arg10: memref<128x128xbf16, #tpu.memory_space<vmem>>, %arg11: memref<1x128xf32, #tpu.memory_space<vmem>>, %arg12: memref<1x8x128xf32, #tpu.memory_space<vmem>>) attributes {dimension_semantics = [#tpu.dimension_semantics<parallel>], iteration_bounds = array<i64: 2>, scalar_prefetch = 0 : i64, scratch_operands = 0 : i64, tpu.core_type = #tpu.core_type<tc>, window_params = [{transform_indices = @transform_0, window_bounds = array<i64: 1, 368, 128>}, {pipeline_mode = #tpu.pipeline_mode<synchronous>, transform_indices = @transform_1, window_bounds = array<i64: 128, 128>}, {pipeline_mode = #tpu.pipeline_mode<synchronous>, transform_indices = @transform_2, window_bounds = array<i64: 1, 128>}, {pipeline_mode = #tpu.pipeline_mode<synchronous>, transform_indices = @transform_3, window_bounds = array<i64: 128, 128>}, {pipeline_mode = #tpu.pipeline_mode<synchronous>, transform_indices = @transform_4, window_bounds = array<i64: 1, 128>}, {pipeline_mode = #tpu.pipeline_mode<synchronous>, transform_indices = @transform_5, window_bounds = array<i64: 256, 128>}, {pipeline_mode = #tpu.pipeline_mode<synchronous>, transform_indices = @transform_6, window_bounds = array<i64: 1, 128>}, {pipeline_mode = #tpu.pipeline_mode<synchronous>, transform_indices = @transform_7, window_bounds = array<i64: 1024, 128>}, {pipeline_mode = #tpu.pipeline_mode<synchronous>, transform_indices = @transform_8, window_bounds = array<i64: 1, 128>}, {pipeline_mode = #tpu.pipeline_mode<synchronous>, transform_indices = @transform_9, window_bounds = array<i64: 128, 128>}, {pipeline_mode = #tpu.pipeline_mode<synchronous>, transform_indices = @transform_10, window_bounds = array<i64: 1, 128>}, {transform_indices = @transform_11, window_bounds = array<i64: 1, 8, 128>}]} {
    %0 = tpu.iota {dimensions = array<i32: 1>} : vector<1x128xi32>
    %c64_i32 = arith.constant 64 : i32
    %1 = vector.broadcast %c64_i32 : i32 to vector<1x128xi32>
    %2 = arith.cmpi slt, %0, %1 : vector<1x128xi32>
    %c0 = arith.constant 0 : index
    %c0_0 = arith.constant 0 : index
    %c0_1 = arith.constant 0 : index
    %3 = vector.load %arg1[%c0, %c0_0, %c0_1] : memref<1x368x128xbf16, #tpu.memory_space<vmem>>, vector<1x368x128xbf16>
    %4 = vector.shape_cast %3 : vector<1x368x128xbf16> to vector<368x128xbf16>
    %c0_2 = arith.constant 0 : index
    %c0_3 = arith.constant 0 : index
    %5 = vector.load %arg2[%c0_2, %c0_3] : memref<128x128xbf16, #tpu.memory_space<vmem>>, vector<128x128xbf16>
    %cst = arith.constant dense<0.000000e+00> : vector<368x128xf32>
    %6 = tpu.matmul %4, %5, %cst {dimension_numbers = #tpu.dot_dimension_numbers<[1], [0], [0], [1], [0, 0, 1, 1], [], []>} : vector<368x128xbf16>, vector<128x128xbf16>, vector<368x128xf32> -> vector<368x128xf32>
    %c0_4 = arith.constant 0 : index
    %c0_5 = arith.constant 0 : index
    %7 = vector.load %arg3[%c0_4, %c0_5] : memref<1x128xf32, #tpu.memory_space<vmem>>, vector<1x128xf32>
    %8 = vector.broadcast %7 : vector<1x128xf32> to vector<368x128xf32>
    %9 = arith.addf %6, %8 : vector<368x128xf32>
    %cst_6 = arith.constant 0.000000e+00 : f32
    %10 = vector.broadcast %cst_6 : f32 to vector<368x128xf32>
    %11 = arith.maximumf %9, %10 : vector<368x128xf32>
    %12 = vector.extract_strided_slice %11 {offsets = [0, 0], sizes = [296, 128], strides = [1, 1]} : vector<368x128xf32> to vector<296x128xf32>
    %13 = vector.extract_strided_slice %11 {offsets = [8, 0], sizes = [296, 128], strides = [1, 1]} : vector<368x128xf32> to vector<296x128xf32>
    %14 = vector.extract_strided_slice %11 {offsets = [64, 0], sizes = [296, 128], strides = [1, 1]} : vector<368x128xf32> to vector<296x128xf32>
    %15 = vector.extract_strided_slice %11 {offsets = [72, 0], sizes = [296, 128], strides = [1, 1]} : vector<368x128xf32> to vector<296x128xf32>
    %c32_i32 = arith.constant 32 : i32
    %16 = vector.broadcast %c32_i32 : i32 to vector<1x128xi32>
    %17 = arith.cmpi slt, %0, %16 : vector<1x128xi32>
    %c64_i32_7 = arith.constant 64 : i32
    %18 = vector.broadcast %c64_i32_7 : i32 to vector<1x128xi32>
    %19 = arith.cmpi slt, %0, %18 : vector<1x128xi32>
    %c96_i32 = arith.constant 96 : i32
    %20 = vector.broadcast %c96_i32 : i32 to vector<1x128xi32>
    %21 = arith.cmpi slt, %0, %20 : vector<1x128xi32>
    %22 = vector.shape_cast %21 : vector<1x128xi1> to vector<1x128xi1>
    %23 = vector.broadcast %22 : vector<1x128xi1> to vector<296x128xi1>
    %24 = arith.select %23, %14, %15 : vector<296x128xi1>, vector<296x128xf32>
    %25 = vector.shape_cast %19 : vector<1x128xi1> to vector<1x128xi1>
    %26 = vector.broadcast %25 : vector<1x128xi1> to vector<296x128xi1>
    %27 = arith.select %26, %13, %24 : vector<296x128xi1>, vector<296x128xf32>
    %28 = vector.shape_cast %17 : vector<1x128xi1> to vector<1x128xi1>
    %29 = vector.broadcast %28 : vector<1x128xi1> to vector<296x128xi1>
    %30 = arith.select %29, %12, %27 : vector<296x128xi1>, vector<296x128xf32>
    %31 = arith.truncf %30 : vector<296x128xf32> to vector<296x128xbf16>
    %c0_8 = arith.constant 0 : index
    %c0_9 = arith.constant 0 : index
    %32 = vector.load %arg4[%c0_8, %c0_9] : memref<128x128xbf16, #tpu.memory_space<vmem>>, vector<128x128xbf16>
    %cst_10 = arith.constant dense<0.000000e+00> : vector<296x128xf32>
    %33 = tpu.matmul %31, %32, %cst_10 {dimension_numbers = #tpu.dot_dimension_numbers<[1], [0], [0], [1], [0, 0, 1, 1], [], []>} : vector<296x128xbf16>, vector<128x128xbf16>, vector<296x128xf32> -> vector<296x128xf32>
    %c0_11 = arith.constant 0 : index
    %c0_12 = arith.constant 0 : index
    %34 = vector.load %arg5[%c0_11, %c0_12] : memref<1x128xf32, #tpu.memory_space<vmem>>, vector<1x128xf32>
    %35 = vector.broadcast %34 : vector<1x128xf32> to vector<296x128xf32>
    %36 = arith.addf %33, %35 : vector<296x128xf32>
    %cst_13 = arith.constant 0.000000e+00 : f32
    %37 = vector.broadcast %cst_13 : f32 to vector<296x128xf32>
    %38 = arith.maximumf %36, %37 : vector<296x128xf32>
    %39 = vector.extract_strided_slice %38 {offsets = [0, 0], sizes = [224, 128], strides = [1, 1]} : vector<296x128xf32> to vector<224x128xf32>
    %40 = vector.extract_strided_slice %38 {offsets = [8, 0], sizes = [224, 128], strides = [1, 1]} : vector<296x128xf32> to vector<224x128xf32>
    %41 = vector.extract_strided_slice %38 {offsets = [64, 0], sizes = [224, 128], strides = [1, 1]} : vector<296x128xf32> to vector<224x128xf32>
    %42 = vector.extract_strided_slice %38 {offsets = [72, 0], sizes = [224, 128], strides = [1, 1]} : vector<296x128xf32> to vector<224x128xf32>
    %43 = vector.shape_cast %2 : vector<1x128xi1> to vector<1x128xi1>
    %44 = vector.broadcast %43 : vector<1x128xi1> to vector<224x128xi1>
    %45 = arith.select %44, %39, %40 : vector<224x128xi1>, vector<224x128xf32>
    %46 = vector.shape_cast %2 : vector<1x128xi1> to vector<1x128xi1>
    %47 = vector.broadcast %46 : vector<1x128xi1> to vector<224x128xi1>
    %48 = arith.select %47, %41, %42 : vector<224x128xi1>, vector<224x128xf32>
    %49 = tpu.concatenate %45, %48 in 1 : vector<224x128xf32>, vector<224x128xf32> -> vector<224x256xf32>
    %50 = arith.truncf %49 : vector<224x256xf32> to vector<224x256xbf16>
    %c0_14 = arith.constant 0 : index
    %c0_15 = arith.constant 0 : index
    %51 = vector.load %arg6[%c0_14, %c0_15] : memref<256x128xbf16, #tpu.memory_space<vmem>>, vector<256x128xbf16>
    %cst_16 = arith.constant dense<0.000000e+00> : vector<224x128xf32>
    %52 = tpu.matmul %50, %51, %cst_16 {dimension_numbers = #tpu.dot_dimension_numbers<[1], [0], [0], [1], [0, 0, 1, 1], [], []>} : vector<224x256xbf16>, vector<256x128xbf16>, vector<224x128xf32> -> vector<224x128xf32>
    %c0_17 = arith.constant 0 : index
    %c0_18 = arith.constant 0 : index
    %53 = vector.load %arg7[%c0_17, %c0_18] : memref<1x128xf32, #tpu.memory_space<vmem>>, vector<1x128xf32>
    %54 = vector.broadcast %53 : vector<1x128xf32> to vector<224x128xf32>
    %55 = arith.addf %52, %54 : vector<224x128xf32>
    %cst_19 = arith.constant 0.000000e+00 : f32
    %56 = vector.broadcast %cst_19 : f32 to vector<224x128xf32>
    %57 = arith.maximumf %55, %56 : vector<224x128xf32>
    %58 = vector.extract_strided_slice %57 {offsets = [0, 0], sizes = [8, 128], strides = [1, 1]} : vector<224x128xf32> to vector<8x128xf32>
    %59 = vector.extract_strided_slice %57 {offsets = [8, 0], sizes = [8, 128], strides = [1, 1]} : vector<224x128xf32> to vector<8x128xf32>
    %60 = vector.shape_cast %2 : vector<1x128xi1> to vector<1x128xi1>
    %61 = vector.broadcast %60 : vector<1x128xi1> to vector<8x128xi1>
    %62 = arith.select %61, %58, %59 : vector<8x128xi1>, vector<8x128xf32>
    %63 = vector.extract_strided_slice %57 {offsets = [16, 0], sizes = [8, 128], strides = [1, 1]} : vector<224x128xf32> to vector<8x128xf32>
    %64 = vector.extract_strided_slice %57 {offsets = [24, 0], sizes = [8, 128], strides = [1, 1]} : vector<224x128xf32> to vector<8x128xf32>
    %65 = vector.shape_cast %2 : vector<1x128xi1> to vector<1x128xi1>
    %66 = vector.broadcast %65 : vector<1x128xi1> to vector<8x128xi1>
    %67 = arith.select %66, %63, %64 : vector<8x128xi1>, vector<8x128xf32>
    %68 = vector.extract_strided_slice %57 {offsets = [64, 0], sizes = [8, 128], strides = [1, 1]} : vector<224x128xf32> to vector<8x128xf32>
    %69 = vector.extract_strided_slice %57 {offsets = [72, 0], sizes = [8, 128], strides = [1, 1]} : vector<224x128xf32> to vector<8x128xf32>
    %70 = vector.shape_cast %2 : vector<1x128xi1> to vector<1x128xi1>
    %71 = vector.broadcast %70 : vector<1x128xi1> to vector<8x128xi1>
    %72 = arith.select %71, %68, %69 : vector<8x128xi1>, vector<8x128xf32>
    %73 = vector.extract_strided_slice %57 {offsets = [80, 0], sizes = [8, 128], strides = [1, 1]} : vector<224x128xf32> to vector<8x128xf32>
    %74 = vector.extract_strided_slice %57 {offsets = [88, 0], sizes = [8, 128], strides = [1, 1]} : vector<224x128xf32> to vector<8x128xf32>
    %75 = vector.shape_cast %2 : vector<1x128xi1> to vector<1x128xi1>
    %76 = vector.broadcast %75 : vector<1x128xi1> to vector<8x128xi1>
    %77 = arith.select %76, %73, %74 : vector<8x128xi1>, vector<8x128xf32>
    %78 = vector.extract_strided_slice %57 {offsets = [128, 0], sizes = [8, 128], strides = [1, 1]} : vector<224x128xf32> to vector<8x128xf32>
    %79 = vector.extract_strided_slice %57 {offsets = [136, 0], sizes = [8, 128], strides = [1, 1]} : vector<224x128xf32> to vector<8x128xf32>
    %80 = vector.shape_cast %2 : vector<1x128xi1> to vector<1x128xi1>
    %81 = vector.broadcast %80 : vector<1x128xi1> to vector<8x128xi1>
    %82 = arith.select %81, %78, %79 : vector<8x128xi1>, vector<8x128xf32>
    %83 = vector.extract_strided_slice %57 {offsets = [144, 0], sizes = [8, 128], strides = [1, 1]} : vector<224x128xf32> to vector<8x128xf32>
    %84 = vector.extract_strided_slice %57 {offsets = [152, 0], sizes = [8, 128], strides = [1, 1]} : vector<224x128xf32> to vector<8x128xf32>
    %85 = vector.shape_cast %2 : vector<1x128xi1> to vector<1x128xi1>
    %86 = vector.broadcast %85 : vector<1x128xi1> to vector<8x128xi1>
    %87 = arith.select %86, %83, %84 : vector<8x128xi1>, vector<8x128xf32>
    %88 = vector.extract_strided_slice %57 {offsets = [192, 0], sizes = [8, 128], strides = [1, 1]} : vector<224x128xf32> to vector<8x128xf32>
    %89 = vector.extract_strided_slice %57 {offsets = [200, 0], sizes = [8, 128], strides = [1, 1]} : vector<224x128xf32> to vector<8x128xf32>
    %90 = vector.shape_cast %2 : vector<1x128xi1> to vector<1x128xi1>
    %91 = vector.broadcast %90 : vector<1x128xi1> to vector<8x128xi1>
    %92 = arith.select %91, %88, %89 : vector<8x128xi1>, vector<8x128xf32>
    %93 = vector.extract_strided_slice %57 {offsets = [208, 0], sizes = [8, 128], strides = [1, 1]} : vector<224x128xf32> to vector<8x128xf32>
    %94 = vector.extract_strided_slice %57 {offsets = [216, 0], sizes = [8, 128], strides = [1, 1]} : vector<224x128xf32> to vector<8x128xf32>
    %95 = vector.shape_cast %2 : vector<1x128xi1> to vector<1x128xi1>
    %96 = vector.broadcast %95 : vector<1x128xi1> to vector<8x128xi1>
    %97 = arith.select %96, %93, %94 : vector<8x128xi1>, vector<8x128xf32>
    %98 = tpu.concatenate %62, %67, %72, %77, %82, %87, %92, %97 in 1 : vector<8x128xf32>, vector<8x128xf32>, vector<8x128xf32>, vector<8x128xf32>, vector<8x128xf32>, vector<8x128xf32>, vector<8x128xf32>, vector<8x128xf32> -> vector<8x1024xf32>
    %99 = arith.truncf %98 : vector<8x1024xf32> to vector<8x1024xbf16>
    %c0_20 = arith.constant 0 : index
    %c0_21 = arith.constant 0 : index
    %100 = vector.load %arg8[%c0_20, %c0_21] : memref<1024x128xbf16, #tpu.memory_space<vmem>>, vector<1024x128xbf16>
    %cst_22 = arith.constant dense<0.000000e+00> : vector<8x128xf32>
    %101 = tpu.matmul %99, %100, %cst_22 {dimension_numbers = #tpu.dot_dimension_numbers<[1], [0], [0], [1], [0, 0, 1, 1], [], []>} : vector<8x1024xbf16>, vector<1024x128xbf16>, vector<8x128xf32> -> vector<8x128xf32>
    %c0_23 = arith.constant 0 : index
    %c0_24 = arith.constant 0 : index
    %102 = vector.load %arg9[%c0_23, %c0_24] : memref<1x128xf32, #tpu.memory_space<vmem>>, vector<1x128xf32>
    %103 = vector.broadcast %102 : vector<1x128xf32> to vector<8x128xf32>
    %104 = arith.addf %101, %103 : vector<8x128xf32>
    %cst_25 = arith.constant 0.000000e+00 : f32
    %105 = vector.broadcast %cst_25 : f32 to vector<8x128xf32>
    %106 = arith.maximumf %104, %105 : vector<8x128xf32>
    %107 = arith.truncf %106 : vector<8x128xf32> to vector<8x128xbf16>
    %c0_26 = arith.constant 0 : index
    %c0_27 = arith.constant 0 : index
    %108 = vector.load %arg10[%c0_26, %c0_27] : memref<128x128xbf16, #tpu.memory_space<vmem>>, vector<128x128xbf16>
    %cst_28 = arith.constant dense<0.000000e+00> : vector<8x128xf32>
    %109 = tpu.matmul %107, %108, %cst_28 {dimension_numbers = #tpu.dot_dimension_numbers<[1], [0], [0], [1], [0, 0, 1, 1], [], []>} : vector<8x128xbf16>, vector<128x128xbf16>, vector<8x128xf32> -> vector<8x128xf32>
    %c0_29 = arith.constant 0 : index
    %c0_30 = arith.constant 0 : index
    %110 = vector.load %arg11[%c0_29, %c0_30] : memref<1x128xf32, #tpu.memory_space<vmem>>, vector<1x128xf32>
    %111 = vector.broadcast %110 : vector<1x128xf32> to vector<8x128xf32>
    %112 = arith.addf %109, %111 : vector<8x128xf32>
    %c0_31 = arith.constant 0 : index
    %c0_32 = arith.constant 0 : index
    %c0_33 = arith.constant 0 : index
    %113 = vector.load %arg12[%c0_31, %c0_32, %c0_33] : memref<1x8x128xf32, #tpu.memory_space<vmem>>, vector<1x8x128xf32>
    %114 = vector.shape_cast %113 : vector<1x8x128xf32> to vector<8x128xf32>
    %115 = vector.shape_cast %112 : vector<8x128xf32> to vector<1x8x128xf32>
    tpu.vector_store %arg12[%c0_31, %c0_32, %c0_33], %115 {strides = array<i32>} : memref<1x8x128xf32, #tpu.memory_space<vmem>>, vector<1x8x128xf32>,
    return
  }
  func.func @transform_0(%arg0: i32) -> (i32, i32, i32) {
    %c0_i32 = arith.constant 0 : i32
    %c0_i32_0 = arith.constant 0 : i32
    %c0_i32_1 = arith.constant 0 : i32
    return %arg0, %c0_i32, %c0_i32_0 : i32, i32, i32
  }
  func.func @transform_1(%arg0: i32) -> (i32, i32) {
    %c0_i32 = arith.constant 0 : i32
    %c0_i32_0 = arith.constant 0 : i32
    %c0_i32_1 = arith.constant 0 : i32
    return %c0_i32, %c0_i32_0 : i32, i32
  }
  func.func @transform_2(%arg0: i32) -> (i32, i32) {
    %c0_i32 = arith.constant 0 : i32
    %c0_i32_0 = arith.constant 0 : i32
    %c0_i32_1 = arith.constant 0 : i32
    return %c0_i32, %c0_i32_0 : i32, i32
  }
  func.func @transform_3(%arg0: i32) -> (i32, i32) {
    %c0_i32 = arith.constant 0 : i32
    %c0_i32_0 = arith.constant 0 : i32
    %c0_i32_1 = arith.constant 0 : i32
    return %c0_i32, %c0_i32_0 : i32, i32
  }
  func.func @transform_4(%arg0: i32) -> (i32, i32) {
    %c0_i32 = arith.constant 0 : i32
    %c0_i32_0 = arith.constant 0 : i32
    %c0_i32_1 = arith.constant 0 : i32
    return %c0_i32, %c0_i32_0 : i32, i32
  }
  func.func @transform_5(%arg0: i32) -> (i32, i32) {
    %c0_i32 = arith.constant 0 : i32
    %c0_i32_0 = arith.constant 0 : i32
    %c0_i32_1 = arith.constant 0 : i32
    return %c0_i32, %c0_i32_0 : i32, i32
  }
  func.func @transform_6(%arg0: i32) -> (i32, i32) {
    %c0_i32 = arith.constant 0 : i32
    %c0_i32_0 = arith.constant 0 : i32
    %c0_i32_1 = arith.constant 0 : i32
    return %c0_i32, %c0_i32_0 : i32, i32
  }
  func.func @transform_7(%arg0: i32) -> (i32, i32) {
    %c0_i32 = arith.constant 0 : i32
    %c0_i32_0 = arith.constant 0 : i32
    %c0_i32_1 = arith.constant 0 : i32
    return %c0_i32, %c0_i32_0 : i32, i32
  }
  func.func @transform_8(%arg0: i32) -> (i32, i32) {
    %c0_i32 = arith.constant 0 : i32
    %c0_i32_0 = arith.constant 0 : i32
    %c0_i32_1 = arith.constant 0 : i32
    return %c0_i32, %c0_i32_0 : i32, i32
  }
  func.func @transform_9(%arg0: i32) -> (i32, i32) {
    %c0_i32 = arith.constant 0 : i32
    %c0_i32_0 = arith.constant 0 : i32
    %c0_i32_1 = arith.constant 0 : i32
    return %c0_i32, %c0_i32_0 : i32, i32
  }
  func.func @transform_10(%arg0: i32) -> (i32, i32) {
    %c0_i32 = arith.constant 0 : i32
    %c0_i32_0 = arith.constant 0 : i32
    %c0_i32_1 = arith.constant 0 : i32
    return %c0_i32, %c0_i32_0 : i32, i32
  }
  func.func @transform_11(%arg0: i32) -> (i32, i32, i32) {
    %c0_i32 = arith.constant 0 : i32
    %c0_i32_0 = arith.constant 0 : i32
    %c0_i32_1 = arith.constant 0 : i32
    return %arg0, %c0_i32, %c0_i32_0 : i32, i32, i32
  }
}

</mosaic_0001>

<llo_original>
// kernel: pursuit_forward.1
$region0: #{pursuit_forward.1}
  #allocation0 [shape = 'u32[]', space=smem, size = 0x4, offset = 0x4, fixed_abs, tag = 'smem constant byte address 0x4 - core index']
  #allocation1 [shape = 'u32[144,128]{1,0:T(1,128)}', space=vmem, size = 0x12000, scoped, tag = 'internal scratch']
  %s0 = inlined_call_operand.vmem [shape: bf16[2,368,128], index: 0, kind: input, shape index: {}]
  %s1 = inlined_call_operand.vmem [shape: bf16[128,128], index: 1, kind: input, shape index: {}]
  %s2 = inlined_call_operand.vmem [shape: f32[1,128], index: 2, kind: input, shape index: {}]
  %s3 = inlined_call_operand.vmem [shape: bf16[128,128], index: 3, kind: input, shape index: {}]
  %s4 = inlined_call_operand.vmem [shape: f32[1,128], index: 4, kind: input, shape index: {}]
  %s5 = inlined_call_operand.vmem [shape: bf16[256,128], index: 5, kind: input, shape index: {}]
  %s6 = inlined_call_operand.vmem [shape: f32[1,128], index: 6, kind: input, shape index: {}]
  %s7 = inlined_call_operand.vmem [shape: bf16[1024,128], index: 7, kind: input, shape index: {}]
  %s8 = inlined_call_operand.vmem [shape: f32[1,128], index: 8, kind: input, shape index: {}]
  %s9 = inlined_call_operand.vmem [shape: bf16[128,128], index: 9, kind: input, shape index: {}]
  %s10 = inlined_call_operand.vmem [shape: f32[1,128], index: 10, kind: input, shape index: {}]
  %s11 = inlined_call_operand.vmem [shape: f32[2,8,128], index: 11, kind: output, shape index: {}]
  %s12 = sld [smem:[#allocation0]]
  $region77: #{pursuit_forward.1} parent=0
    _
  %s14 = ssub.s32 1, %s12
  %s15 = scalar_select 0, %s14, %s12
  loop: start=0, step=1, limit=4
  $region2: #{pursuit_forward.1} parent=0 // loop_pre_header
    _
  $region3: #{pursuit_forward.1} parent=0 // loop_header
    %s17 = sphi 0, %s21
    %p18 = scmp.ge.s32.totalorder %s17, 4
    %s27 = sphi 0, %s29
    %s30 = sphi 0, %s27
    %s31 = sphi 0, %s30
    %s47 = sphi 0, %s31
    %s51 = sphi 0, %s51
    %s53 = sphi 0, %s51
    %s54 = sphi 0, %s53
    %s68 = sphi 0, %s54
    %s72 = sphi 0, %s72
    %s74 = sphi 0, %s72
    %s75 = sphi 0, %s74
    %s89 = sphi 0, %s75
    %s93 = sphi 0, %s93
    %s95 = sphi 0, %s93
    %s96 = sphi 0, %s95
    %s110 = sphi 0, %s96
    %s114 = sphi 0, %s114
    %s116 = sphi 0, %s114
    %s117 = sphi 0, %s116
    %s131 = sphi 0, %s117
    %s135 = sphi 0, %s135
    %s137 = sphi 0, %s135
    %s138 = sphi 0, %s137
    %s152 = sphi 0, %s138
    %s156 = sphi 0, %s156
    %s158 = sphi 0, %s156
    %s159 = sphi 0, %s158
    %s173 = sphi 0, %s159
    %s177 = sphi 0, %s177
    %s179 = sphi 0, %s177
    %s180 = sphi 0, %s179
    %s194 = sphi 0, %s180
    %s198 = sphi 0, %s198
    %s200 = sphi 0, %s198
    %s201 = sphi 0, %s200
    %s215 = sphi 0, %s201
    %s219 = sphi 0, %s219
    %s221 = sphi 0, %s219
    %s222 = sphi 0, %s221
    %s236 = sphi 0, %s222
    %s240 = sphi 0, %s240
    %s242 = sphi 0, %s240
    %s243 = sphi 0, %s242
    %s257 = sphi 0, %s243
    %s263 = sphi 0, %s265
    %s266 = sphi 0, %s263
    %s267 = sphi 0, %s266
    %s283 = sphi 0, %s267
  $region4: #{pursuit_forward.1} parent=0 // loop_header_branch
    %20 = sbr.rel (%p18) target = $region8
  $region5: #{pursuit_forward.1} parent=0 // loop_body
    %s22 = ssub.s32 %s17, 1
    %s23 = ssub.s32 %s17, 2
    %s24 = sadd.s32 %s17, 1
    %s25 = ssub.s32 %s17, %s24
    %p26 = scmp.eq.s32.totalorder %s25, 0
    %s28 = sadd.s32 %s27, 1
    %s29 = scalar_select %p26, %s27, %s28
    %p32 = pneg %p26
    %p33 = scmp.eq.s32.totalorder %s17, 1
    %p34 = por %p32, %p33
    %p35 = scmp.ne.s32.totalorder %s27, %s30
    %p36 = scmp.eq.s32.totalorder %s17, 0
    %p37 = por %p35, %p36
    %p38 = scmp.ne.s32.totalorder %s27, %s30
    %p39 = scmp.eq.s32.totalorder %s22, 1
    %p40 = por %p38, %p39
    %p41 = scmp.ne.s32.totalorder %s30, %s31
    %p42 = scmp.eq.s32.totalorder %s22, 0
    %p43 = por %p41, %p42
    %p44 = scmp.ne.s32.totalorder %s30, %s31
    %p45 = scmp.eq.s32.totalorder %s23, 1
    %p46 = por %p44, %p45
    %p48 = scmp.ne.s32.totalorder %s31, %s47
    %p49 = scmp.eq.s32.totalorder %s23, 0
    %p50 = por %p48, %p49
    %s52 = sadd.s32 %s51, 1
    %p55 = scmp.eq.s32.totalorder %s17, 1
    %p56 = scmp.ne.s32.totalorder %s51, %s53
    %p57 = scmp.eq.s32.totalorder %s17, 0
    %p58 = por %p56, %p57
    %p59 = scmp.ne.s32.totalorder %s51, %s53
    %p60 = scmp.eq.s32.totalorder %s22, 1
    %p61 = por %p59, %p60
    %p62 = scmp.ne.s32.totalorder %s53, %s54
    %p63 = scmp.eq.s32.totalorder %s22, 0
    %p64 = por %p62, %p63
    %p65 = scmp.ne.s32.totalorder %s53, %s54
    %p66 = scmp.eq.s32.totalorder %s23, 1
    %p67 = por %p65, %p66
    %p69 = scmp.ne.s32.totalorder %s54, %s68
    %p70 = scmp.eq.s32.totalorder %s23, 0
    %p71 = por %p69, %p70
    %s73 = sadd.s32 %s72, 1
    %p76 = scmp.eq.s32.totalorder %s17, 1
    %p77 = scmp.ne.s32.totalorder %s72, %s74
    %p78 = scmp.eq.s32.totalorder %s17, 0
    %p79 = por %p77, %p78
    %p80 = scmp.ne.s32.totalorder %s72, %s74
    %p81 = scmp.eq.s32.totalorder %s22, 1
    %p82 = por %p80, %p81
    %p83 = scmp.ne.s32.totalorder %s74, %s75
    %p84 = scmp.eq.s32.totalorder %s22, 0
    %p85 = por %p83, %p84
    %p86 = scmp.ne.s32.totalorder %s74, %s75
    %p87 = scmp.eq.s32.totalorder %s23, 1
    %p88 = por %p86, %p87
    %p90 = scmp.ne.s32.totalorder %s75, %s89
    %p91 = scmp.eq.s32.totalorder %s23, 0
    %p92 = por %p90, %p91
    %s94 = sadd.s32 %s93, 1
    %p97 = scmp.eq.s32.totalorder %s17, 1
    %p98 = scmp.ne.s32.totalorder %s93, %s95
    %p99 = scmp.eq.s32.totalorder %s17, 0
    %p100 = por %p98, %p99
    %p101 = scmp.ne.s32.totalorder %s93, %s95
    %p102 = scmp.eq.s32.totalorder %s22, 1
    %p103 = por %p101, %p102
    %p104 = scmp.ne.s32.totalorder %s95, %s96
    %p105 = scmp.eq.s32.totalorder %s22, 0
    %p106 = por %p104, %p105
    %p107 = scmp.ne.s32.totalorder %s95, %s96
    %p108 = scmp.eq.s32.totalorder %s23, 1
    %p109 = por %p107, %p108
    %p111 = scmp.ne.s32.totalorder %s96, %s110
    %p112 = scmp.eq.s32.totalorder %s23, 0
    %p113 = por %p111, %p112
    %s115 = sadd.s32 %s114, 1
    %p118 = scmp.eq.s32.totalorder %s17, 1
    %p119 = scmp.ne.s32.totalorder %s114, %s116
    %p120 = scmp.eq.s32.totalorder %s17, 0
    %p121 = por %p119, %p120
    %p122 = scmp.ne.s32.totalorder %s114, %s116
    %p123 = scmp.eq.s32.totalorder %s22, 1
    %p124 = por %p122, %p123
    %p125 = scmp.ne.s32.totalorder %s116, %s117
    %p126 = scmp.eq.s32.totalorder %s22, 0
    %p127 = por %p125, %p126
    %p128 = scmp.ne.s32.totalorder %s116, %s117
    %p129 = scmp.eq.s32.totalorder %s23, 1
    %p130 = por %p128, %p129
    %p132 = scmp.ne.s32.totalorder %s117, %s131
    %p133 = scmp.eq.s32.totalorder %s23, 0
    %p134 = por %p132, %p133
    %s136 = sadd.s32 %s135, 1
    %p139 = scmp.eq.s32.totalorder %s17, 1
    %p140 = scmp.ne.s32.totalorder %s135, %s137
    %p141 = scmp.eq.s32.totalorder %s17, 0
    %p142 = por %p140, %p141
    %p143 = scmp.ne.s32.totalorder %s135, %s137
    %p144 = scmp.eq.s32.totalorder %s22, 1
    %p145 = por %p143, %p144
    %p146 = scmp.ne.s32.totalorder %s137, %s138
    %p147 = scmp.eq.s32.totalorder %s22, 0
    %p148 = por %p146, %p147
    %p149 = scmp.ne.s32.totalorder %s137, %s138
    %p150 = scmp.eq.s32.totalorder %s23, 1
    %p151 = por %p149, %p150
    %p153 = scmp.ne.s32.totalorder %s138, %s152
    %p154 = scmp.eq.s32.totalorder %s23, 0
    %p155 = por %p153, %p154
    %s157 = sadd.s32 %s156, 1
    %p160 = scmp.eq.s32.totalorder %s17, 1
    %p161 = scmp.ne.s32.totalorder %s156, %s158
    %p162 = scmp.eq.s32.totalorder %s17, 0
    %p163 = por %p161, %p162
    %p164 = scmp.ne.s32.totalorder %s156, %s158
    %p165 = scmp.eq.s32.totalorder %s22, 1
    %p166 = por %p164, %p165
    %p167 = scmp.ne.s32.totalorder %s158, %s159
    %p168 = scmp.eq.s32.totalorder %s22, 0
    %p169 = por %p167, %p168
    %p170 = scmp.ne.s32.totalorder %s158, %s159
    %p171 = scmp.eq.s32.totalorder %s23, 1
    %p172 = por %p170, %p171
    %p174 = scmp.ne.s32.totalorder %s159, %s173
    %p175 = scmp.eq.s32.totalorder %s23, 0
    %p176 = por %p174, %p175
    %s178 = sadd.s32 %s177, 1
    %p181 = scmp.eq.s32.totalorder %s17, 1
    %p182 = scmp.ne.s32.totalorder %s177, %s179
    %p183 = scmp.eq.s32.totalorder %s17, 0
    %p184 = por %p182, %p183
    %p185 = scmp.ne.s32.totalorder %s177, %s179
    %p186 = scmp.eq.s32.totalorder %s22, 1
    %p187 = por %p185, %p186
    %p188 = scmp.ne.s32.totalorder %s179, %s180
    %p189 = scmp.eq.s32.totalorder %s22, 0
    %p190 = por %p188, %p189
    %p191 = scmp.ne.s32.totalorder %s179, %s180
    %p192 = scmp.eq.s32.totalorder %s23, 1
    %p193 = por %p191, %p192
    %p195 = scmp.ne.s32.totalorder %s180, %s194
    %p196 = scmp.eq.s32.totalorder %s23, 0
    %p197 = por %p195, %p196
    %s199 = sadd.s32 %s198, 1
    %p202 = scmp.eq.s32.totalorder %s17, 1
    %p203 = scmp.ne.s32.totalorder %s198, %s200
    %p204 = scmp.eq.s32.totalorder %s17, 0
    %p205 = por %p203, %p204
    %p206 = scmp.ne.s32.totalorder %s198, %s200
    %p207 = scmp.eq.s32.totalorder %s22, 1
    %p208 = por %p206, %p207
    %p209 = scmp.ne.s32.totalorder %s200, %s201
    %p210 = scmp.eq.s32.totalorder %s22, 0
    %p211 = por %p209, %p210
    %p212 = scmp.ne.s32.totalorder %s200, %s201
    %p213 = scmp.eq.s32.totalorder %s23, 1
    %p214 = por %p212, %p213
    %p216 = scmp.ne.s32.totalorder %s201, %s215
    %p217 = scmp.eq.s32.totalorder %s23, 0
    %p218 = por %p216, %p217
    %s220 = sadd.s32 %s219, 1
    %p223 = scmp.eq.s32.totalorder %s17, 1
    %p224 = scmp.ne.s32.totalorder %s219, %s221
    %p225 = scmp.eq.s32.totalorder %s17, 0
    %p226 = por %p224, %p225
    %p227 = scmp.ne.s32.totalorder %s219, %s221
    %p228 = scmp.eq.s32.totalorder %s22, 1
    %p229 = por %p227, %p228
    %p230 = scmp.ne.s32.totalorder %s221, %s222
    %p231 = scmp.eq.s32.totalorder %s22, 0
    %p232 = por %p230, %p231
    %p233 = scmp.ne.s32.totalorder %s221, %s222
    %p234 = scmp.eq.s32.totalorder %s23, 1
    %p235 = por %p233, %p234
    %p237 = scmp.ne.s32.totalorder %s222, %s236
    %p238 = scmp.eq.s32.totalorder %s23, 0
    %p239 = por %p237, %p238
    %s241 = sadd.s32 %s240, 1
    %p244 = scmp.eq.s32.totalorder %s17, 1
    %p245 = scmp.ne.s32.totalorder %s240, %s242
    %p246 = scmp.eq.s32.totalorder %s17, 0
    %p247 = por %p245, %p246
    %p248 = scmp.ne.s32.totalorder %s240, %s242
    %p249 = scmp.eq.s32.totalorder %s22, 1
    %p250 = por %p248, %p249
    %p251 = scmp.ne.s32.totalorder %s242, %s243
    %p252 = scmp.eq.s32.totalorder %s22, 0
    %p253 = por %p251, %p252
    %p254 = scmp.ne.s32.totalorder %s242, %s243
    %p255 = scmp.eq.s32.totalorder %s23, 1
    %p256 = por %p254, %p255
    %p258 = scmp.ne.s32.totalorder %s243, %s257
    %p259 = scmp.eq.s32.totalorder %s23, 0
    %p260 = por %p258, %p259
    %s261 = ssub.s32 %s17, %s24
    %p262 = scmp.eq.s32.totalorder %s261, 0
    %s264 = sadd.s32 %s263, 1
    %s265 = scalar_select %p262, %s263, %s264
    %p268 = pneg %p262
    %p269 = scmp.eq.s32.totalorder %s17, 1
    %p270 = por %p268, %p269
    %p271 = scmp.ne.s32.totalorder %s263, %s266
    %p272 = scmp.eq.s32.totalorder %s17, 0
    %p273 = por %p271, %p272
    %p274 = scmp.ne.s32.totalorder %s263, %s266
    %p275 = scmp.eq.s32.totalorder %s22, 1
    %p276 = por %p274, %p275
    %p277 = scmp.ne.s32.totalorder %s266, %s267
    %p278 = scmp.eq.s32.totalorder %s22, 0
    %p279 = por %p277, %p278
    %p280 = scmp.ne.s32.totalorder %s266, %s267
    %p281 = scmp.eq.s32.totalorder %s23, 1
    %p282 = por %p280, %p281
    %p284 = scmp.ne.s32.totalorder %s267, %s283
    %p285 = scmp.eq.s32.totalorder %s23, 0
    %p286 = por %p284, %p285
    %p287 = scmp.le.s32.totalorder 1, %s17
    %p288 = scmp.lt.s32.totalorder %s17, 3
    %p289 = pnand %p287, %p288
    %p290 = pneg %p289
    // Predicated region
    $region9: #{pursuit_forward.1} parent=5 // pred_check
      _
    $region10: #{pursuit_forward.1} parent=5 // pred_check_branch
      %292 = sbr.rel (%p289) target = $region12
    $region11: #{pursuit_forward.1} parent=5 // pred_region
      %s293 = ssub.s32 %s17, 1
      // Predicated region
      $region13: #{pursuit_forward.1} parent=11 // pred_check
        %p294 = pneg %p64
      $region14: #{pursuit_forward.1} parent=11 // pred_check_branch
        %296 = sbr.rel (%p294) target = $region16
      $region15: #{pursuit_forward.1} parent=11 // pred_region
        _
      $region16: #{pursuit_forward.1} parent=11 // pred_fallthru
        _
      // Predicated region
      $region17: #{pursuit_forward.1} parent=11 // pred_check
        %p297 = pneg %p85
      $region18: #{pursuit_forward.1} parent=11 // pred_check_branch
        %299 = sbr.rel (%p297) target = $region20
      $region19: #{pursuit_forward.1} parent=11 // pred_region
        _
      $region20: #{pursuit_forward.1} parent=11 // pred_fallthru
        _
      // Predicated region
      $region21: #{pursuit_forward.1} parent=11 // pred_check
        %p300 = pneg %p106
      $region22: #{pursuit_forward.1} parent=11 // pred_check_branch
        %302 = sbr.rel (%p300) target = $region24
      $region23: #{pursuit_forward.1} parent=11 // pred_region
        _
      $region24: #{pursuit_forward.1} parent=11 // pred_fallthru
        _
      // Predicated region
      $region25: #{pursuit_forward.1} parent=11 // pred_check
        %p303 = pneg %p127
      $region26: #{pursuit_forward.1} parent=11 // pred_check_branch
        %305 = sbr.rel (%p303) target = $region28
      $region27: #{pursuit_forward.1} parent=11 // pred_region
        _
      $region28: #{pursuit_forward.1} parent=11 // pred_fallthru
        _
      // Predicated region
      $region29: #{pursuit_forward.1} parent=11 // pred_check
        %p306 = pneg %p148
      $region30: #{pursuit_forward.1} parent=11 // pred_check_branch
        %308 = sbr.rel (%p306) target = $region32
      $region31: #{pursuit_forward.1} parent=11 // pred_region
        _
      $region32: #{pursuit_forward.1} parent=11 // pred_fallthru
        _
      // Predicated region
      $region33: #{pursuit_forward.1} parent=11 // pred_check
        %p309 = pneg %p169
      $region34: #{pursuit_forward.1} parent=11 // pred_check_branch
        %311 = sbr.rel (%p309) target = $region36
      $region35: #{pursuit_forward.1} parent=11 // pred_region
        _
      $region36: #{pursuit_forward.1} parent=11 // pred_fallthru
        _
      // Predicated region
      $region37: #{pursuit_forward.1} parent=11 // pred_check
        %p312 = pneg %p190
      $region38: #{pursuit_forward.1} parent=11 // pred_check_branch
        %314 = sbr.rel (%p312) target = $region40
      $region39: #{pursuit_forward.1} parent=11 // pred_region
        _
      $region40: #{pursuit_forward.1} parent=11 // pred_fallthru
        _
      // Predicated region
      $region41: #{pursuit_forward.1} parent=11 // pred_check
        %p315 = pneg %p211
      $region42: #{pursuit_forward.1} parent=11 // pred_check_branch
        %317 = sbr.rel (%p315) target = $region44
      $region43: #{pursuit_forward.1} parent=11 // pred_region
        _
      $region44: #{pursuit_forward.1} parent=11 // pred_fallthru
        _
      // Predicated region
      $region45: #{pursuit_forward.1} parent=11 // pred_check
        %p318 = pneg %p232
      $region46: #{pursuit_forward.1} parent=11 // pred_check_branch
        %320 = sbr.rel (%p318) target = $region48
      $region47: #{pursuit_forward.1} parent=11 // pred_region
        _
      $region48: #{pursuit_forward.1} parent=11 // pred_fallthru
        _
      // Predicated region
      $region49: #{pursuit_forward.1} parent=11 // pred_check
        %p321 = pneg %p253
      $region50: #{pursuit_forward.1} parent=11 // pred_check_branch
        %323 = sbr.rel (%p321) target = $region52
      $region51: #{pursuit_forward.1} parent=11 // pred_region
        _
      $region52: #{pursuit_forward.1} parent=11 // pred_fallthru
        _
    $region12: #{pursuit_forward.1} parent=5 // pred_fallthru
      _
    %p324 = scmp.lt.s32.totalorder %s17, 2
    // Predicated region
    $region53: #{pursuit_forward.1} parent=5 // pred_check
      %p325 = pneg %p324
    $region54: #{pursuit_forward.1} parent=5 // pred_check_branch
      %327 = sbr.rel (%p325) target = $region56
    $region55: #{pursuit_forward.1} parent=5 // pred_region
      // Predicated region
      $region57: #{pursuit_forward.1} parent=55 // pred_check
        %p328 = pneg %p37
      $region58: #{pursuit_forward.1} parent=55 // pred_check_branch
        %330 = sbr.rel (%p328) target = $region60
      $region59: #{pursuit_forward.1} parent=55 // pred_region
        %p331 = scmp.lt.s32.totalorder %s17, 1
        %s332 = scalar_select %p331, %s17, 1
        %s333 = smul.addr %s332, 46
        %s334 = smul.addr %s333, 4
        %s335 = scalar_lea.vmem %s0, %s334
      $region60: #{pursuit_forward.1} parent=55 // pred_fallthru
        _
    $region56: #{pursuit_forward.1} parent=5 // pred_fallthru
      _
    %p336 = scmp.le.s32.totalorder 1, %s17
    %p337 = scmp.lt.s32.totalorder %s17, 3
    %p338 = pnand %p336, %p337
    %p339 = pneg %p338
    // Predicated region
    $region61: #{pursuit_forward.1} parent=5 // pred_check
      _
    $region62: #{pursuit_forward.1} parent=5 // pred_check_branch
      %341 = sbr.rel (%p338) target = $region64
    $region63: #{pursuit_forward.1} parent=5 // pred_region
      %s342 = ssub.s32 %s17, 1
      %p343 = scmp.lt.s32.totalorder %s22, 1
      %s344 = scalar_select %p343, %s22, 1
      %s345 = smul.addr %s344, 46
      %s346 = smul.addr %s345, 4
      %s347 = scalar_lea.vmem %s0, %s346
      %p348 = pneg %p43
      %p349 = pneg %p40
      %p350 = pneg %p64
      %p351 = pneg %p61
      %p352 = pneg %p85
      %p353 = pneg %p82
      %p354 = pneg %p106
      %p355 = pneg %p103
      %p356 = pneg %p127
      %p357 = pneg %p124
      %p358 = pneg %p148
      %p359 = pneg %p145
      %p360 = pneg %p169
      %p361 = pneg %p166
      %p362 = pneg %p190
      %p363 = pneg %p187
      %p364 = pneg %p211
      %p365 = pneg %p208
      %p366 = pneg %p232
      %p367 = pneg %p229
      %p368 = pneg %p253
      %p369 = pneg %p250
      %p370 = pneg %p279
      %p371 = pneg %p276
      %p372 = scmp.lt.s32.totalorder %s22, 1
      %s373 = scalar_select %p372, %s22, 1
      %s374 = smul.addr %s373, 8
      %s375 = scalar_lea.vmem %s11, %s374
      %p376 = scmp.lt.s32.totalorder %s22, 1
      %s377 = scalar_select %p376, %s22, 1
      %s378 = smul.addr %s377, 46
      %s379 = smul.addr %s378, 4
      %s380 = scalar_lea.vmem %s0, %s379
      %p381 = scmp.lt.s32.totalorder %s22, 1
      %s382 = scalar_select %p381, %s22, 1
      %s383 = smul.addr %s382, 8
      %s384 = scalar_lea.vmem %s11, %s383
      %v386 = vlaneseq
      %v387 = vand.u32 %v386, 127
      %vm388 = vcmp.lt.s32.totalorder %v387, 64
      %v389 = vld [vmem:[%s380] sm:$0xf]
      %v390 = vld [vmem:[%s380 + $0x4] sm:$0xf]
      %v391 = vld [vmem:[%s380 + $0x8] sm:$0xf]
      %v392 = vld [vmem:[%s380 + $0xc] sm:$0xf]
      %v393 = vld [vmem:[%s380 + $0x10] sm:$0xf]
      %v394 = vld [vmem:[%s380 + $0x14] sm:$0xf]
      %v395 = vld [vmem:[%s380 + $0x18] sm:$0xf]
      %v396 = vld [vmem:[%s380 + $0x1c] sm:$0xf]
      %v397 = vld [vmem:[%s380 + $0x20] sm:$0xf]
      %v398 = vld [vmem:[%s380 + $0x24] sm:$0xf]
      %v399 = vld [vmem:[%s380 + $0x28] sm:$0xf]
      %v400 = vld [vmem:[%s380 + $0x2c] sm:$0xf]
      %v401 = vld [vmem:[%s380 + $0x30] sm:$0xf]
      %v402 = vld [vmem:[%s380 + $0x34] sm:$0xf]
      %v403 = vld [vmem:[%s380 + $0x38] sm:$0xf]
      %v404 = vld [vmem:[%s380 + $0x3c] sm:$0xf]
      %v405 = vld [vmem:[%s380 + $0x40] sm:$0xf]
      %v406 = vld [vmem:[%s380 + $0x44] sm:$0xf]
      %v407 = vld [vmem:[%s380 + $0x48] sm:$0xf]
      %v408 = vld [vmem:[%s380 + $0x4c] sm:$0xf]
      %v409 = vld [vmem:[%s380 + $0x50] sm:$0xf]
      %v410 = vld [vmem:[%s380 + $0x54] sm:$0xf]
      %v411 = vld [vmem:[%s380 + $0x58] sm:$0xf]
      %v412 = vld [vmem:[%s380 + $0x5c] sm:$0xf]
      %v413 = vld [vmem:[%s380 + $0x60] sm:$0xf]
      %v414 = vld [vmem:[%s380 + $0x64] sm:$0xf]
      %v415 = vld [vmem:[%s380 + $0x68] sm:$0xf]
      %v416 = vld [vmem:[%s380 + $0x6c] sm:$0xf]
      %v417 = vld [vmem:[%s380 + $0x70] sm:$0xf]
      %v418 = vld [vmem:[%s380 + $0x74] sm:$0xf]
      %v419 = vld [vmem:[%s380 + $0x78] sm:$0xf]
      %v420 = vld [vmem:[%s380 + $0x7c] sm:$0xf]
      %v421 = vld [vmem:[%s380 + $0x80] sm:$0xf]
      %v422 = vld [vmem:[%s380 + $0x84] sm:$0xf]
      %v423 = vld [vmem:[%s380 + $0x88] sm:$0xf]
      %v424 = vld [vmem:[%s380 + $0x8c] sm:$0xf]
      %v425 = vld [vmem:[%s380 + $0x90] sm:$0xf]
      %v426 = vld [vmem:[%s380 + $0x94] sm:$0xf]
      %v427 = vld [vmem:[%s380 + $0x98] sm:$0xf]
      %v428 = vld [vmem:[%s380 + $0x9c] sm:$0xf]
      %v429 = vld [vmem:[%s380 + $0xa0] sm:$0xf]
      %v430 = vld [vmem:[%s380 + $0xa4] sm:$0xf]
      %v431 = vld [vmem:[%s380 + $0xa8] sm:$0xf]
      %v432 = vld [vmem:[%s380 + $0xac] sm:$0xf]
      %v433 = vld [vmem:[%s380 + $0xb0] sm:$0xf]
      %v434 = vld [vmem:[%s380 + $0xb4] sm:$0xf]
      %v435 = vld [vmem:[%s1] sm:$0xf]
      %v436 = vld [vmem:[%s1 + $0x4] sm:$0xf]
      %v437 = vld [vmem:[%s1 + $0x8] sm:$0xf]
      %v438 = vld [vmem:[%s1 + $0xc] sm:$0xf]
      %v439 = vld [vmem:[%s1 + $0x10] sm:$0xf]
      %v440 = vld [vmem:[%s1 + $0x14] sm:$0xf]
      %v441 = vld [vmem:[%s1 + $0x18] sm:$0xf]
      %v442 = vld [vmem:[%s1 + $0x1c] sm:$0xf]
      %v443 = vld [vmem:[%s1 + $0x20] sm:$0xf]
      %v444 = vld [vmem:[%s1 + $0x24] sm:$0xf]
      %v445 = vld [vmem:[%s1 + $0x28] sm:$0xf]
      %v446 = vld [vmem:[%s1 + $0x2c] sm:$0xf]
      %v447 = vld [vmem:[%s1 + $0x30] sm:$0xf]
      %v448 = vld [vmem:[%s1 + $0x34] sm:$0xf]
      %v449 = vld [vmem:[%s1 + $0x38] sm:$0xf]
      %v450 = vld [vmem:[%s1 + $0x3c] sm:$0xf]
      %v451 = vld [vmem:[%s2] sm:$0x1]
      %v453 = vlaneseq
      %v454 = vshrl.u32 %v453, 7
      %v455 = vsub.s32 0, %v454
      %v456 = vrot.slane %v451, %v455
      %v504 = vunpack.c.l.b16 %v389
      %v505 = vunpack.c.l.b16 %v390
      %v506 = vunpack.c.l.b16 %v391
      %v507 = vunpack.c.l.b16 %v392
      %v508 = vunpack.c.l.b16 %v393
      %v509 = vunpack.c.l.b16 %v394
      %v510 = vunpack.c.l.b16 %v395
      %v511 = vunpack.c.l.b16 %v396
      %v512 = vunpack.c.l.b16 %v397
      %v513 = vunpack.c.l.b16 %v398
      %v514 = vunpack.c.l.b16 %v399
      %v515 = vunpack.c.l.b16 %v400
      %v516 = vunpack.c.l.b16 %v401
      %v517 = vunpack.c.l.b16 %v402
      %v518 = vunpack.c.l.b16 %v403
      %v519 = vunpack.c.l.b16 %v404
      %v520 = vunpack.c.l.b16 %v405
      %v521 = vunpack.c.l.b16 %v406
      %v522 = vunpack.c.l.b16 %v407
      %v523 = vunpack.c.l.b16 %v408
      %v524 = vunpack.c.l.b16 %v409
      %v525 = vunpack.c.l.b16 %v410
      %v526 = vunpack.c.l.b16 %v411
      %v527 = vunpack.c.l.b16 %v412
      %v528 = vunpack.c.l.b16 %v413
      %v529 = vunpack.c.l.b16 %v414
      %v530 = vunpack.c.l.b16 %v415
      %v531 = vunpack.c.l.b16 %v416
      %v532 = vunpack.c.l.b16 %v417
      %v533 = vunpack.c.l.b16 %v418
      %v534 = vunpack.c.l.b16 %v419
      %v535 = vunpack.c.l.b16 %v420
      %v536 = vunpack.c.l.b16 %v421
      %v537 = vunpack.c.l.b16 %v422
      %v538 = vunpack.c.l.b16 %v423
      %v539 = vunpack.c.l.b16 %v424
      %v540 = vunpack.c.l.b16 %v425
      %v541 = vunpack.c.l.b16 %v426
      %v542 = vunpack.c.l.b16 %v427
      %v543 = vunpack.c.l.b16 %v428
      %v544 = vunpack.c.l.b16 %v429
      %v545 = vunpack.c.l.b16 %v430
      %v546 = vunpack.c.l.b16 %v431
      %v547 = vunpack.c.l.b16 %v432
      %v548 = vunpack.c.l.b16 %v433
      %v549 = vunpack.c.l.b16 %v434
      %v550 = vpack.c.b16 %v505, %v504
      %v551 = vpack.c.b16 %v507, %v506
      %v552 = vpack.c.b16 %v509, %v508
      %v553 = vpack.c.b16 %v511, %v510
      %v554 = vpack.c.b16 %v513, %v512
      %v555 = vpack.c.b16 %v515, %v514
      %v556 = vpack.c.b16 %v517, %v516
      %v557 = vpack.c.b16 %v519, %v518
      %v558 = vpack.c.b16 %v521, %v520
      %v559 = vpack.c.b16 %v523, %v522
      %v560 = vpack.c.b16 %v525, %v524
      %v561 = vpack.c.b16 %v527, %v526
      %v562 = vpack.c.b16 %v529, %v528
      %v563 = vpack.c.b16 %v531, %v530
      %v564 = vpack.c.b16 %v533, %v532
      %v565 = vpack.c.b16 %v535, %v534
      %v566 = vpack.c.b16 %v537, %v536
      %v567 = vpack.c.b16 %v539, %v538
      %v568 = vpack.c.b16 %v541, %v540
      %v569 = vpack.c.b16 %v543, %v542
      %v570 = vpack.c.b16 %v545, %v544
      %v571 = vpack.c.b16 %v547, %v546
      %v572 = vpack.c.b16 %v549, %v548
      %v612 = vunpack.c.l.b16 %v435
      %v613 = vunpack.c.l.b16 %v436
      %v614 = vunpack.c.l.b16 %v437
      %v615 = vunpack.c.l.b16 %v438
      %v616 = vunpack.c.l.b16 %v439
      %v617 = vunpack.c.l.b16 %v440
      %v618 = vunpack.c.l.b16 %v441
      %v619 = vunpack.c.l.b16 %v442
      %v620 = vunpack.c.l.b16 %v443
      %v621 = vunpack.c.l.b16 %v444
      %v622 = vunpack.c.l.b16 %v445
      %v623 = vunpack.c.l.b16 %v446
      %v624 = vunpack.c.l.b16 %v447
      %v625 = vunpack.c.l.b16 %v448
      %v626 = vunpack.c.l.b16 %v449
      %v627 = vunpack.c.l.b16 %v450
      %v628 = vpack.c.b16 %v613, %v612
      %v629 = vpack.c.b16 %v615, %v614
      %v630 = vpack.c.b16 %v617, %v616
      %v631 = vpack.c.b16 %v619, %v618
      %v632 = vpack.c.b16 %v621, %v620
      %v633 = vpack.c.b16 %v623, %v622
      %v634 = vpack.c.b16 %v625, %v624
      %v635 = vpack.c.b16 %v627, %v626
      %644 = vmatprep.subr.bf16.mxu0 0
      %645 = vmatpush1.bf16.msra.mxu0 %v628
      %646 = vmatprep.subr.bf16.mxu0 0
      %647 = vmatpush1.bf16.msra.mxu0 %v629
      %648 = vmatprep.subr.bf16.mxu0 0
      %649 = vmatpush1.bf16.msra.mxu0 %v630
      %650 = vmatprep.subr.bf16.mxu0 0
      %651 = vmatpush1.bf16.msra.mxu0 %v631
      %652 = vmatprep.subr.bf16.mxu0 0
      %653 = vmatpush1.bf16.msra.mxu0 %v632
      %654 = vmatprep.subr.bf16.mxu0 0
      %655 = vmatpush1.bf16.msra.mxu0 %v633
      %656 = vmatprep.subr.bf16.mxu0 0
      %657 = vmatpush1.bf16.msra.mxu0 %v634
      %658 = vmatprep.subr.bf16.mxu0 0
      %659 = vmatpush1.bf16.msra.mxu0 %v635
      %660 = vmatprep.subr.bf16.mxu0 0
      %661 = vmatpush1.bf16.msra.mxu0 0
      %662 = vmatprep.subr.bf16.mxu0 0
      %663 = vmatpush1.bf16.msra.mxu0 0
      %664 = vmatprep.subr.bf16.mxu0 0
      %665 = vmatpush1.bf16.msra.mxu0 0
      %666 = vmatprep.subr.bf16.mxu0 0
      %667 = vmatpush1.bf16.msra.mxu0 0
      %668 = vmatprep.subr.bf16.mxu0 0
      %669 = vmatpush1.bf16.msra.mxu0 0
      %670 = vmatprep.subr.bf16.mxu0 0
      %671 = vmatpush1.bf16.msra.mxu0 0
      %672 = vmatprep.subr.bf16.mxu0 0
      %673 = vmatpush1.bf16.msra.mxu0 0
      %674 = vmatprep.subr.bf16.mxu0 0
      %675 = vmatpush1.bf16.msra.mxu0 0
      %676 = vmatprep.mubr.bf16.mxu0 0
      %677 = vmatmul.mubr.bf16.gmra.mrb[0].mxu0 %v550
      %v678 = vpop.f32.mrb[0].mxu0
      %v679 = vadd.f32 %v456, %v678
      %v680 = vpop.f32.mrb[0].mxu0
      %v681 = vpop.f32.mrb[0].mxu0
      %v682 = vadd.f32 %v456, %v681
      %v683 = vpop.f32.mrb[0].mxu0
      %684 = vmatprep.mubr.bf16.mxu0 0
      %685 = vmatmul.mubr.bf16.gmra.mrb[0].mxu0 %v551
      %v686 = vpop.f32.mrb[0].mxu0
      %v687 = vadd.f32 %v456, %v686
      %v688 = vpop.f32.mrb[0].mxu0
      %v689 = vpop.f32.mrb[0].mxu0
      %v690 = vadd.f32 %v456, %v689
      %v691 = vpop.f32.mrb[0].mxu0
      %692 = vmatprep.mubr.bf16.mxu0 0
      %693 = vmatmul.mubr.bf16.gmra.mrb[0].mxu0 %v552
      %v694 = vpop.f32.mrb[0].mxu0
      %v695 = vadd.f32 %v456, %v694
      %v696 = vpop.f32.mrb[0].mxu0
      %v697 = vpop.f32.mrb[0].mxu0
      %v698 = vadd.f32 %v456, %v697
      %v699 = vpop.f32.mrb[0].mxu0
      %700 = vmatprep.mubr.bf16.mxu0 0
      %701 = vmatmul.mubr.bf16.gmra.mrb[0].mxu0 %v553
      %v702 = vpop.f32.mrb[0].mxu0
      %v703 = vadd.f32 %v456, %v702
      %v704 = vpop.f32.mrb[0].mxu0
      %v705 = vpop.f32.mrb[0].mxu0
      %v706 = vadd.f32 %v456, %v705
      %v707 = vpop.f32.mrb[0].mxu0
      %708 = vmatprep.mubr.bf16.mxu0 0
      %709 = vmatmul.mubr.bf16.gmra.mrb[0].mxu0 %v554
      %v710 = vpop.f32.mrb[0].mxu0
      %v711 = vadd.f32 %v456, %v710
      %v712 = vpop.f32.mrb[0].mxu0
      %v713 = vpop.f32.mrb[0].mxu0
      %v714 = vadd.f32 %v456, %v713
      %v715 = vpop.f32.mrb[0].mxu0
      %716 = vmatprep.mubr.bf16.mxu0 0
      %717 = vmatmul.mubr.bf16.gmra.mrb[0].mxu0 %v555
      %v718 = vpop.f32.mrb[0].mxu0
      %v719 = vadd.f32 %v456, %v718
      %v720 = vpop.f32.mrb[0].mxu0
      %v721 = vpop.f32.mrb[0].mxu0
      %v722 = vadd.f32 %v456, %v721
      %v723 = vpop.f32.mrb[0].mxu0
      %724 = vmatprep.mubr.bf16.mxu0 0
      %725 = vmatmul.mubr.bf16.gmra.mrb[0].mxu0 %v556
      %v726 = vpop.f32.mrb[0].mxu0
      %v727 = vadd.f32 %v456, %v726
      %v728 = vpop.f32.mrb[0].mxu0
      %v729 = vpop.f32.mrb[0].mxu0
      %v730 = vadd.f32 %v456, %v729
      %v731 = vpop.f32.mrb[0].mxu0
      %732 = vmatprep.mubr.bf16.mxu0 0
      %733 = vmatmul.mubr.bf16.gmra.mrb[0].mxu0 %v557
      %v734 = vpop.f32.mrb[0].mxu0
      %v735 = vadd.f32 %v456, %v734
      %v736 = vpop.f32.mrb[0].mxu0
      %v737 = vpop.f32.mrb[0].mxu0
      %v738 = vadd.f32 %v456, %v737
      %v739 = vpop.f32.mrb[0].mxu0
      %740 = vmatprep.mubr.bf16.mxu0 0
      %741 = vmatmul.mubr.bf16.gmra.mrb[0].mxu0 %v558
      %v742 = vpop.f32.mrb[0].mxu0
      %v743 = vadd.f32 %v456, %v742
      %v744 = vpop.f32.mrb[0].mxu0
      %v745 = vpop.f32.mrb[0].mxu0
      %v746 = vadd.f32 %v456, %v745
      %v747 = vpop.f32.mrb[0].mxu0
      %748 = vmatprep.mubr.bf16.mxu0 0
      %749 = vmatmul.mubr.bf16.gmra.mrb[0].mxu0 %v559
      %v750 = vpop.f32.mrb[0].mxu0
      %v751 = vadd.f32 %v456, %v750
      %v752 = vpop.f32.mrb[0].mxu0
      %v753 = vpop.f32.mrb[0].mxu0
      %v754 = vadd.f32 %v456, %v753
      %v755 = vpop.f32.mrb[0].mxu0
      %756 = vmatprep.mubr.bf16.mxu0 0
      %757 = vmatmul.mubr.bf16.gmra.mrb[0].mxu0 %v560
      %v758 = vpop.f32.mrb[0].mxu0
      %v759 = vadd.f32 %v456, %v758
      %v760 = vpop.f32.mrb[0].mxu0
      %v761 = vpop.f32.mrb[0].mxu0
      %v762 = vadd.f32 %v456, %v761
      %v763 = vpop.f32.mrb[0].mxu0
      %764 = vmatprep.mubr.bf16.mxu0 0
      %765 = vmatmul.mubr.bf16.gmra.mrb[0].mxu0 %v561
      %v766 = vpop.f32.mrb[0].mxu0
      %v767 = vadd.f32 %v456, %v766
      %v768 = vpop.f32.mrb[0].mxu0
      %v769 = vpop.f32.mrb[0].mxu0
      %v770 = vadd.f32 %v456, %v769
      %v771 = vpop.f32.mrb[0].mxu0
      %772 = vmatprep.mubr.bf16.mxu0 0
      %773 = vmatmul.mubr.bf16.gmra.mrb[0].mxu0 %v562
      %v774 = vpop.f32.mrb[0].mxu0
      %v775 = vadd.f32 %v456, %v774
      %v776 = vpop.f32.mrb[0].mxu0
      %v777 = vpop.f32.mrb[0].mxu0
      %v778 = vadd.f32 %v456, %v777
      %v779 = vpop.f32.mrb[0].mxu0
      %780 = vmatprep.mubr.bf16.mxu0 0
      %781 = vmatmul.mubr.bf16.gmra.mrb[0].mxu0 %v563
      %v782 = vpop.f32.mrb[0].mxu0
      %v783 = vadd.f32 %v456, %v782
      %v784 = vpop.f32.mrb[0].mxu0
      %v785 = vpop.f32.mrb[0].mxu0
      %v786 = vadd.f32 %v456, %v785
      %v787 = vpop.f32.mrb[0].mxu0
      %788 = vmatprep.mubr.bf16.mxu0 0
      %789 = vmatmul.mubr.bf16.gmra.mrb[0].mxu0 %v564
      %v790 = vpop.f32.mrb[0].mxu0
      %v791 = vadd.f32 %v456, %v790
      %v792 = vpop.f32.mrb[0].mxu0
      %v793 = vpop.f32.mrb[0].mxu0
      %v794 = vadd.f32 %v456, %v793
      %v795 = vpop.f32.mrb[0].mxu0
      %796 = vmatprep.mubr.bf16.mxu0 0
      %797 = vmatmul.mubr.bf16.gmra.mrb[0].mxu0 %v565
      %v798 = vpop.f32.mrb[0].mxu0
      %v799 = vadd.f32 %v456, %v798
      %v800 = vpop.f32.mrb[0].mxu0
      %v801 = vpop.f32.mrb[0].mxu0
      %v802 = vadd.f32 %v456, %v801
      %v803 = vpop.f32.mrb[0].mxu0
      %804 = vmatprep.mubr.bf16.mxu0 0
      %805 = vmatmul.mubr.bf16.gmra.mrb[0].mxu0 %v566
      %v806 = vpop.f32.mrb[0].mxu0
      %v807 = vadd.f32 %v456, %v806
      %v808 = vpop.f32.mrb[0].mxu0
      %v809 = vpop.f32.mrb[0].mxu0
      %v810 = vadd.f32 %v456, %v809
      %v811 = vpop.f32.mrb[0].mxu0
      %812 = vmatprep.mubr.bf16.mxu0 0
      %813 = vmatmul.mubr.bf16.gmra.mrb[0].mxu0 %v567
      %v814 = vpop.f32.mrb[0].mxu0
      %v815 = vadd.f32 %v456, %v814
      %v816 = vpop.f32.mrb[0].mxu0
      %v817 = vpop.f32.mrb[0].mxu0
      %v818 = vadd.f32 %v456, %v817
      %v819 = vpop.f32.mrb[0].mxu0
      %820 = vmatprep.mubr.bf16.mxu0 0
      %821 = vmatmul.mubr.bf16.gmra.mrb[0].mxu0 %v568
      %v822 = vpop.f32.mrb[0].mxu0
      %v823 = vadd.f32 %v456, %v822
      %v824 = vpop.f32.mrb[0].mxu0
      %v825 = vpop.f32.mrb[0].mxu0
      %v826 = vadd.f32 %v456, %v825
      %v827 = vpop.f32.mrb[0].mxu0
      %828 = vmatprep.mubr.bf16.mxu0 0
      %829 = vmatmul.mubr.bf16.gmra.mrb[0].mxu0 %v569
      %v830 = vpop.f32.mrb[0].mxu0
      %v831 = vadd.f32 %v456, %v830
      %v832 = vpop.f32.mrb[0].mxu0
      %v833 = vpop.f32.mrb[0].mxu0
      %v834 = vadd.f32 %v456, %v833
      %v835 = vpop.f32.mrb[0].mxu0
      %836 = vmatprep.mubr.bf16.mxu0 0
      %837 = vmatmul.mubr.bf16.gmra.mrb[0].mxu0 %v570
      %v838 = vpop.f32.mrb[0].mxu0
      %v839 = vadd.f32 %v456, %v838
      %v840 = vpop.f32.mrb[0].mxu0
      %v841 = vpop.f32.mrb[0].mxu0
      %v842 = vadd.f32 %v456, %v841
      %v843 = vpop.f32.mrb[0].mxu0
      %844 = vmatprep.mubr.bf16.mxu0 0
      %845 = vmatmul.mubr.bf16.gmra.mrb[0].mxu0 %v571
      %v846 = vpop.f32.mrb[0].mxu0
      %v847 = vadd.f32 %v456, %v846
      %v848 = vpop.f32.mrb[0].mxu0
      %v849 = vpop.f32.mrb[0].mxu0
      %v850 = vadd.f32 %v456, %v849
      %v851 = vpop.f32.mrb[0].mxu0
      %852 = vmatprep.mubr.bf16.mxu0 0
      %853 = vmatmul.mubr.bf16.gmra.mrb[0].mxu0 %v572
      %v854 = vpop.f32.mrb[0].mxu0
      %v855 = vadd.f32 %v456, %v854
      %v856 = vpop.f32.mrb[0].mxu0
      %v857 = vpop.f32.mrb[0].mxu0
      %v858 = vadd.f32 %v456, %v857
      %v859 = vpop.f32.mrb[0].mxu0
      %860 = vdwg.mxu0
      %v861 = vmax.f32 %v679, 0.0
      %v862 = vmax.f32 %v682, 0.0
      %v863 = vmax.f32 %v687, 0.0
      %v864 = vmax.f32 %v690, 0.0
      %v865 = vmax.f32 %v695, 0.0
      %v866 = vmax.f32 %v698, 0.0
      %v867 = vmax.f32 %v703, 0.0
      %v868 = vmax.f32 %v706, 0.0
      %v869 = vmax.f32 %v711, 0.0
      %v870 = vmax.f32 %v714, 0.0
      %v871 = vmax.f32 %v719, 0.0
      %v872 = vmax.f32 %v722, 0.0
      %v873 = vmax.f32 %v727, 0.0
      %v874 = vmax.f32 %v730, 0.0
      %v875 = vmax.f32 %v735, 0.0
      %v876 = vmax.f32 %v738, 0.0
      %v877 = vmax.f32 %v743, 0.0
      %v878 = vmax.f32 %v746, 0.0
      %v879 = vmax.f32 %v751, 0.0
      %v880 = vmax.f32 %v754, 0.0
      %v881 = vmax.f32 %v759, 0.0
      %v882 = vmax.f32 %v762, 0.0
      %v883 = vmax.f32 %v767, 0.0
      %v884 = vmax.f32 %v770, 0.0
      %v885 = vmax.f32 %v775, 0.0
      %v886 = vmax.f32 %v778, 0.0
      %v887 = vmax.f32 %v783, 0.0
      %v888 = vmax.f32 %v786, 0.0
      %v889 = vmax.f32 %v791, 0.0
      %v890 = vmax.f32 %v794, 0.0
      %v891 = vmax.f32 %v799, 0.0
      %v892 = vmax.f32 %v802, 0.0
      %v893 = vmax.f32 %v807, 0.0
      %v894 = vmax.f32 %v810, 0.0
      %v895 = vmax.f32 %v815, 0.0
      %v896 = vmax.f32 %v818, 0.0
      %v897 = vmax.f32 %v823, 0.0
      %v898 = vmax.f32 %v826, 0.0
      %v899 = vmax.f32 %v831, 0.0
      %v900 = vmax.f32 %v834, 0.0
      %v901 = vmax.f32 %v839, 0.0
      %v902 = vmax.f32 %v842, 0.0
      %v903 = vmax.f32 %v847, 0.0
      %v904 = vmax.f32 %v850, 0.0
      %v905 = vmax.f32 %v855, 0.0
      %v906 = vmax.f32 %v858, 0.0
      %vm907 = vcmp.lt.s32.totalorder %v387, 32
      %vm908 = vcmp.lt.s32.totalorder %v387, 96
      %v909 = vsel %vm908, 1, 0
      %vm910 = vcmp.eq.s32.totalorder %v909, 1
      %v911 = vsel %vm910, %v869, %v870
      %v912 = vsel %vm910, %v870, %v871
      %v913 = vsel %vm910, %v871, %v872
      %v914 = vsel %vm910, %v872, %v873
      %v915 = vsel %vm910, %v873, %v874
      %v916 = vsel %vm910, %v874, %v875
      %v917 = vsel %vm910, %v875, %v876
      %v918 = vsel %vm910, %v876, %v877
      %v919 = vsel %vm910, %v877, %v878
      %v920 = vsel %vm910, %v878, %v879
      %v921 = vsel %vm910, %v879, %v880
      %v922 = vsel %vm910, %v880, %v881
      %v923 = vsel %vm910, %v881, %v882
      %v924 = vsel %vm910, %v882, %v883
      %v925 = vsel %vm910, %v883, %v884
      %v926 = vsel %vm910, %v884, %v885
      %v927 = vsel %vm910, %v885, %v886
      %v928 = vsel %vm910, %v886, %v887
      %v929 = vsel %vm910, %v887, %v888
      %v930 = vsel %vm910, %v888, %v889
      %v931 = vsel %vm910, %v889, %v890
      %v932 = vsel %vm910, %v890, %v891
      %v933 = vsel %vm910, %v891, %v892
      %v934 = vsel %vm910, %v892, %v893
      %v935 = vsel %vm910, %v893, %v894
      %v936 = vsel %vm910, %v894, %v895
      %v937 = vsel %vm910, %v895, %v896
      %v938 = vsel %vm910, %v896, %v897
      %v939 = vsel %vm910, %v897, %v898
      %v940 = vsel %vm910, %v898, %v899
      %v941 = vsel %vm910, %v899, %v900
      %v942 = vsel %vm910, %v900, %v901
      %v943 = vsel %vm910, %v901, %v902
      %v944 = vsel %vm910, %v902, %v903
      %v945 = vsel %vm910, %v903, %v904
      %v946 = vsel %vm910, %v904, %v905
      %v947 = vsel %vm910, %v905, %v906
      %v948 = vsel %vm388, 1, 0
      %vm949 = vcmp.eq.s32.totalorder %v948, 1
      %v950 = vsel %vm949, %v862, %v911
      %v951 = vsel %vm949, %v863, %v912
      %v952 = vsel %vm949, %v864, %v913
      %v953 = vsel %vm949, %v865, %v914
      %v954 = vsel %vm949, %v866, %v915
      %v955 = vsel %vm949, %v867, %v916
      %v956 = vsel %vm949, %v868, %v917
      %v957 = vsel %vm949, %v869, %v918
      %v958 = vsel %vm949, %v870, %v919
      %v959 = vsel %vm949, %v871, %v920
      %v960 = vsel %vm949, %v872, %v921
      %v961 = vsel %vm949, %v873, %v922
      %v962 = vsel %vm949, %v874, %v923
      %v963 = vsel %vm949, %v875, %v924
      %v964 = vsel %vm949, %v876, %v925
      %v965 = vsel %vm949, %v877, %v926
      %v966 = vsel %vm949, %v878, %v927
      %v967 = vsel %vm949, %v879, %v928
      %v968 = vsel %vm949, %v880, %v929
      %v969 = vsel %vm949, %v881, %v930
      %v970 = vsel %vm949, %v882, %v931
      %v971 = vsel %vm949, %v883, %v932
      %v972 = vsel %vm949, %v884, %v933
      %v973 = vsel %vm949, %v885, %v934
      %v974 = vsel %vm949, %v886, %v935
      %v975 = vsel %vm949, %v887, %v936
      %v976 = vsel %vm949, %v888, %v937
      %v977 = vsel %vm949, %v889, %v938
      %v978 = vsel %vm949, %v890, %v939
      %v979 = vsel %vm949, %v891, %v940
      %v980 = vsel %vm949, %v892, %v941
      %v981 = vsel %vm949, %v893, %v942
      %v982 = vsel %vm949, %v894, %v943
      %v983 = vsel %vm949, %v895, %v944
      %v984 = vsel %vm949, %v896, %v945
      %v985 = vsel %vm949, %v897, %v946
      %v986 = vsel %vm949, %v898, %v947
      %v987 = vsel %vm907, 1, 0
      %vm988 = vcmp.eq.s32.totalorder %v987, 1
      %v989 = vsel %vm988, %v861, %v950
      %v990 = vsel %vm988, %v862, %v951
      %v991 = vsel %vm988, %v863, %v952
      %v992 = vsel %vm988, %v864, %v953
      %v993 = vsel %vm988, %v865, %v954
      %v994 = vsel %vm988, %v866, %v955
      %v995 = vsel %vm988, %v867, %v956
      %v996 = vsel %vm988, %v868, %v957
      %v997 = vsel %vm988, %v869, %v958
      %v998 = vsel %vm988, %v870, %v959
      %v999 = vsel %vm988, %v871, %v960
      %v1000 = vsel %vm988, %v872, %v961
      %v1001 = vsel %vm988, %v873, %v962
      %v1002 = vsel %vm988, %v874, %v963
      %v1003 = vsel %vm988, %v875, %v964
      %v1004 = vsel %vm988, %v876, %v965
      %v1005 = vsel %vm988, %v877, %v966
      %v1006 = vsel %vm988, %v878, %v967
      %v1007 = vsel %vm988, %v879, %v968
      %v1008 = vsel %vm988, %v880, %v969
      %v1009 = vsel %vm988, %v881, %v970
      %v1010 = vsel %vm988, %v882, %v971
      %v1011 = vsel %vm988, %v883, %v972
      %v1012 = vsel %vm988, %v884, %v973
      %v1013 = vsel %vm988, %v885, %v974
      %v1014 = vsel %vm988, %v886, %v975
      %v1015 = vsel %vm988, %v887, %v976
      %v1016 = vsel %vm988, %v888, %v977
      %v1017 = vsel %vm988, %v889, %v978
      %v1018 = vsel %vm988, %v890, %v979
      %v1019 = vsel %vm988, %v891, %v980
      %v1020 = vsel %vm988, %v892, %v981
      %v1021 = vsel %vm988, %v893, %v982
      %v1022 = vsel %vm988, %v894, %v983
      %v1023 = vsel %vm988, %v895, %v984
      %v1024 = vsel %vm988, %v896, %v985
      %v1025 = vsel %vm988, %v897, %v986
      %v1026 = vpack.c.bf16 %v990, %v989
      %v1027 = vpack.c.bf16 %v992, %v991
      %v1028 = vpack.c.bf16 %v994, %v993
      %v1029 = vpack.c.bf16 %v996, %v995
      %v1030 = vpack.c.bf16 %v998, %v997
      %v1031 = vpack.c.bf16 %v1000, %v999
      %v1032 = vpack.c.bf16 %v1002, %v1001
      %v1033 = vpack.c.bf16 %v1004, %v1003
      %v1034 = vpack.c.bf16 %v1006, %v1005
      %v1035 = vpack.c.bf16 %v1008, %v1007
      %v1036 = vpack.c.bf16 %v1010, %v1009
      %v1037 = vpack.c.bf16 %v1012, %v1011
      %v1038 = vpack.c.bf16 %v1014, %v1013
      %v1039 = vpack.c.bf16 %v1016, %v1015
      %v1040 = vpack.c.bf16 %v1018, %v1017
      %v1041 = vpack.c.bf16 %v1020, %v1019
      %v1042 = vpack.c.bf16 %v1022, %v1021
      %v1043 = vpack.c.bf16 %v1024, %v1023
      %v1044 = vpack.c.bf16 %v1025, %v1025
      %v1045 = vld [vmem:[%s3] sm:$0xf]
      %v1046 = vld [vmem:[%s3 + $0x4] sm:$0xf]
      %v1047 = vld [vmem:[%s3 + $0x8] sm:$0xf]
      %v1048 = vld [vmem:[%s3 + $0xc] sm:$0xf]
      %v1049 = vld [vmem:[%s3 + $0x10] sm:$0xf]
      %v1050 = vld [vmem:[%s3 + $0x14] sm:$0xf]
      %v1051 = vld [vmem:[%s3 + $0x18] sm:$0xf]
      %v1052 = vld [vmem:[%s3 + $0x1c] sm:$0xf]
      %v1053 = vld [vmem:[%s3 + $0x20] sm:$0xf]
      %v1054 = vld [vmem:[%s3 + $0x24] sm:$0xf]
      %v1055 = vld [vmem:[%s3 + $0x28] sm:$0xf]
      %v1056 = vld [vmem:[%s3 + $0x2c] sm:$0xf]
      %v1057 = vld [vmem:[%s3 + $0x30] sm:$0xf]
      %v1058 = vld [vmem:[%s3 + $0x34] sm:$0xf]
      %v1059 = vld [vmem:[%s3 + $0x38] sm:$0xf]
      %v1060 = vld [vmem:[%s3 + $0x3c] sm:$0xf]
      %v1061 = vld [vmem:[%s4] sm:$0x1]
      %v1063 = vlaneseq
      %v1064 = vshrl.u32 %v1063, 7
      %v1065 = vsub.s32 0, %v1064
      %v1066 = vrot.slane %v1061, %v1065
      %v1084 = vunpack.c.l.b16 %v1045
      %v1085 = vunpack.c.l.b16 %v1046
      %v1086 = vunpack.c.l.b16 %v1047
      %v1087 = vunpack.c.l.b16 %v1048
      %v1088 = vunpack.c.l.b16 %v1049
      %v1089 = vunpack.c.l.b16 %v1050
      %v1090 = vunpack.c.l.b16 %v1051
      %v1091 = vunpack.c.l.b16 %v1052
      %v1092 = vunpack.c.l.b16 %v1053
      %v1093 = vunpack.c.l.b16 %v1054
      %v1094 = vunpack.c.l.b16 %v1055
      %v1095 = vunpack.c.l.b16 %v1056
      %v1096 = vunpack.c.l.b16 %v1057
      %v1097 = vunpack.c.l.b16 %v1058
      %v1098 = vunpack.c.l.b16 %v1059
      %v1099 = vunpack.c.l.b16 %v1060
      %v1100 = vpack.c.b16 %v1085, %v1084
      %v1101 = vpack.c.b16 %v1087, %v1086
      %v1102 = vpack.c.b16 %v1089, %v1088
      %v1103 = vpack.c.b16 %v1091, %v1090
      %v1104 = vpack.c.b16 %v1093, %v1092
      %v1105 = vpack.c.b16 %v1095, %v1094
      %v1106 = vpack.c.b16 %v1097, %v1096
      %v1107 = vpack.c.b16 %v1099, %v1098
      %1116 = vmatprep.subr.bf16.mxu0 0
      %1117 = vmatpush1.bf16.msra.mxu0 %v1100
      %1118 = vmatprep.subr.bf16.mxu0 0
      %1119 = vmatpush1.bf16.msra.mxu0 %v1101
      %1120 = vmatprep.subr.bf16.mxu0 0
      %1121 = vmatpush1.bf16.msra.mxu0 %v1102
      %1122 = vmatprep.subr.bf16.mxu0 0
      %1123 = vmatpush1.bf16.msra.mxu0 %v1103
      %1124 = vmatprep.subr.bf16.mxu0 0
      %1125 = vmatpush1.bf16.msra.mxu0 %v1104
      %1126 = vmatprep.subr.bf16.mxu0 0
      %1127 = vmatpush1.bf16.msra.mxu0 %v1105
      %1128 = vmatprep.subr.bf16.mxu0 0
      %1129 = vmatpush1.bf16.msra.mxu0 %v1106
      %1130 = vmatprep.subr.bf16.mxu0 0
      %1131 = vmatpush1.bf16.msra.mxu0 %v1107
      %1132 = vmatprep.subr.bf16.mxu0 0
      %1133 = vmatpush1.bf16.msra.mxu0 0
      %1134 = vmatprep.subr.bf16.mxu0 0
      %1135 = vmatpush1.bf16.msra.mxu0 0
      %1136 = vmatprep.subr.bf16.mxu0 0
      %1137 = vmatpush1.bf16.msra.mxu0 0
      %1138 = vmatprep.subr.bf16.mxu0 0
      %1139 = vmatpush1.bf16.msra.mxu0 0
      %1140 = vmatprep.subr.bf16.mxu0 0
      %1141 = vmatpush1.bf16.msra.mxu0 0
      %1142 = vmatprep.subr.bf16.mxu0 0
      %1143 = vmatpush1.bf16.msra.mxu0 0
      %1144 = vmatprep.subr.bf16.mxu0 0
      %1145 = vmatpush1.bf16.msra.mxu0 0
      %1146 = vmatprep.subr.bf16.mxu0 0
      %1147 = vmatpush1.bf16.msra.mxu0 0
      %1148 = vmatprep.mubr.bf16.mxu0 0
      %1149 = vmatmul.mubr.bf16.gmra.mrb[0].mxu0 %v1026
      %v1150 = vpop.f32.mrb[0].mxu0
      %v1151 = vadd.f32 %v1066, %v1150
      %v1152 = vpop.f32.mrb[0].mxu0
      %v1153 = vpop.f32.mrb[0].mxu0
      %v1154 = vadd.f32 %v1066, %v1153
      %v1155 = vpop.f32.mrb[0].mxu0
      %1156 = vmatprep.mubr.bf16.mxu0 0
      %1157 = vmatmul.mubr.bf16.gmra.mrb[0].mxu0 %v1027
      %v1158 = vpop.f32.mrb[0].mxu0
      %v1159 = vadd.f32 %v1066, %v1158
      %v1160 = vpop.f32.mrb[0].mxu0
      %v1161 = vpop.f32.mrb[0].mxu0
      %v1162 = vadd.f32 %v1066, %v1161
      %v1163 = vpop.f32.mrb[0].mxu0
      %1164 = vmatprep.mubr.bf16.mxu0 0
      %1165 = vmatmul.mubr.bf16.gmra.mrb[0].mxu0 %v1028
      %v1166 = vpop.f32.mrb[0].mxu0
      %v1167 = vadd.f32 %v1066, %v1166
      %v1168 = vpop.f32.mrb[0].mxu0
      %v1169 = vpop.f32.mrb[0].mxu0
      %v1170 = vadd.f32 %v1066, %v1169
      %v1171 = vpop.f32.mrb[0].mxu0
      %1172 = vmatprep.mubr.bf16.mxu0 0
      %1173 = vmatmul.mubr.bf16.gmra.mrb[0].mxu0 %v1029
      %v1174 = vpop.f32.mrb[0].mxu0
      %v1175 = vadd.f32 %v1066, %v1174
      %v1176 = vpop.f32.mrb[0].mxu0
      %v1177 = vpop.f32.mrb[0].mxu0
      %v1178 = vadd.f32 %v1066, %v1177
      %v1179 = vpop.f32.mrb[0].mxu0
      %1180 = vmatprep.mubr.bf16.mxu0 0
      %1181 = vmatmul.mubr.bf16.gmra.mrb[0].mxu0 %v1030
      %v1182 = vpop.f32.mrb[0].mxu0
      %v1183 = vadd.f32 %v1066, %v1182
      %v1184 = vpop.f32.mrb[0].mxu0
      %v1185 = vpop.f32.mrb[0].mxu0
      %v1186 = vadd.f32 %v1066, %v1185
      %v1187 = vpop.f32.mrb[0].mxu0
      %1188 = vmatprep.mubr.bf16.mxu0 0
      %1189 = vmatmul.mubr.bf16.gmra.mrb[0].mxu0 %v1031
      %v1190 = vpop.f32.mrb[0].mxu0
      %v1191 = vadd.f32 %v1066, %v1190
      %v1192 = vpop.f32.mrb[0].mxu0
      %v1193 = vpop.f32.mrb[0].mxu0
      %v1194 = vadd.f32 %v1066, %v1193
      %v1195 = vpop.f32.mrb[0].mxu0
      %1196 = vmatprep.mubr.bf16.mxu0 0
      %1197 = vmatmul.mubr.bf16.gmra.mrb[0].mxu0 %v1032
      %v1198 = vpop.f32.mrb[0].mxu0
      %v1199 = vadd.f32 %v1066, %v1198
      %v1200 = vpop.f32.mrb[0].mxu0
      %v1201 = vpop.f32.mrb[0].mxu0
      %v1202 = vadd.f32 %v1066, %v1201
      %v1203 = vpop.f32.mrb[0].mxu0
      %1204 = vmatprep.mubr.bf16.mxu0 0
      %1205 = vmatmul.mubr.bf16.gmra.mrb[0].mxu0 %v1033
      %v1206 = vpop.f32.mrb[0].mxu0
      %v1207 = vadd.f32 %v1066, %v1206
      %v1208 = vpop.f32.mrb[0].mxu0
      %v1209 = vpop.f32.mrb[0].mxu0
      %v1210 = vadd.f32 %v1066, %v1209
      %v1211 = vpop.f32.mrb[0].mxu0
      %1212 = vmatprep.mubr.bf16.mxu0 0
      %1213 = vmatmul.mubr.bf16.gmra.mrb[0].mxu0 %v1034
      %v1214 = vpop.f32.mrb[0].mxu0
      %v1215 = vadd.f32 %v1066, %v1214
      %v1216 = vpop.f32.mrb[0].mxu0
      %v1217 = vpop.f32.mrb[0].mxu0
      %v1218 = vadd.f32 %v1066, %v1217
      %v1219 = vpop.f32.mrb[0].mxu0
      %1220 = vmatprep.mubr.bf16.mxu0 0
      %1221 = vmatmul.mubr.bf16.gmra.mrb[0].mxu0 %v1035
      %v1222 = vpop.f32.mrb[0].mxu0
      %v1223 = vadd.f32 %v1066, %v1222
      %v1224 = vpop.f32.mrb[0].mxu0
      %v1225 = vpop.f32.mrb[0].mxu0
      %v1226 = vadd.f32 %v1066, %v1225
      %v1227 = vpop.f32.mrb[0].mxu0
      %1228 = vmatprep.mubr.bf16.mxu0 0
      %1229 = vmatmul.mubr.bf16.gmra.mrb[0].mxu0 %v1036
      %v1230 = vpop.f32.mrb[0].mxu0
      %v1231 = vadd.f32 %v1066, %v1230
      %v1232 = vpop.f32.mrb[0].mxu0
      %v1233 = vpop.f32.mrb[0].mxu0
      %v1234 = vadd.f32 %v1066, %v1233
      %v1235 = vpop.f32.mrb[0].mxu0
      %1236 = vmatprep.mubr.bf16.mxu0 0
      %1237 = vmatmul.mubr.bf16.gmra.mrb[0].mxu0 %v1037
      %v1238 = vpop.f32.mrb[0].mxu0
      %v1239 = vadd.f32 %v1066, %v1238
      %v1240 = vpop.f32.mrb[0].mxu0
      %v1241 = vpop.f32.mrb[0].mxu0
      %v1242 = vadd.f32 %v1066, %v1241
      %v1243 = vpop.f32.mrb[0].mxu0
      %1244 = vmatprep.mubr.bf16.mxu0 0
      %1245 = vmatmul.mubr.bf16.gmra.mrb[0].mxu0 %v1038
      %v1246 = vpop.f32.mrb[0].mxu0
      %v1247 = vadd.f32 %v1066, %v1246
      %v1248 = vpop.f32.mrb[0].mxu0
      %v1249 = vpop.f32.mrb[0].mxu0
      %v1250 = vadd.f32 %v1066, %v1249
      %v1251 = vpop.f32.mrb[0].mxu0
      %1252 = vmatprep.mubr.bf16.mxu0 0
      %1253 = vmatmul.mubr.bf16.gmra.mrb[0].mxu0 %v1039
      %v1254 = vpop.f32.mrb[0].mxu0
      %v1255 = vadd.f32 %v1066, %v1254
      %v1256 = vpop.f32.mrb[0].mxu0
      %v1257 = vpop.f32.mrb[0].mxu0
      %v1258 = vadd.f32 %v1066, %v1257
      %v1259 = vpop.f32.mrb[0].mxu0
      %1260 = vmatprep.mubr.bf16.mxu0 0
      %1261 = vmatmul.mubr.bf16.gmra.mrb[0].mxu0 %v1040
      %v1262 = vpop.f32.mrb[0].mxu0
      %v1263 = vadd.f32 %v1066, %v1262
      %v1264 = vpop.f32.mrb[0].mxu0
      %v1265 = vpop.f32.mrb[0].mxu0
      %v1266 = vadd.f32 %v1066, %v1265
      %v1267 = vpop.f32.mrb[0].mxu0
      %1268 = vmatprep.mubr.bf16.mxu0 0
      %1269 = vmatmul.mubr.bf16.gmra.mrb[0].mxu0 %v1041
      %v1270 = vpop.f32.mrb[0].mxu0
      %v1271 = vadd.f32 %v1066, %v1270
      %v1272 = vpop.f32.mrb[0].mxu0
      %v1273 = vpop.f32.mrb[0].mxu0
      %v1274 = vadd.f32 %v1066, %v1273
      %v1275 = vpop.f32.mrb[0].mxu0
      %1276 = vmatprep.mubr.bf16.mxu0 0
      %1277 = vmatmul.mubr.bf16.gmra.mrb[0].mxu0 %v1042
      %v1278 = vpop.f32.mrb[0].mxu0
      %v1279 = vadd.f32 %v1066, %v1278
      %v1280 = vpop.f32.mrb[0].mxu0
      %v1281 = vpop.f32.mrb[0].mxu0
      %v1282 = vadd.f32 %v1066, %v1281
      %v1283 = vpop.f32.mrb[0].mxu0
      %1284 = vmatprep.mubr.bf16.mxu0 0
      %1285 = vmatmul.mubr.bf16.gmra.mrb[0].mxu0 %v1043
      %v1286 = vpop.f32.mrb[0].mxu0
      %v1287 = vadd.f32 %v1066, %v1286
      %v1288 = vpop.f32.mrb[0].mxu0
      %v1289 = vpop.f32.mrb[0].mxu0
      %v1290 = vadd.f32 %v1066, %v1289
      %v1291 = vpop.f32.mrb[0].mxu0
      %1292 = vmatprep.mubr.bf16.mxu0 0
      %1293 = vmatmul.mubr.bf16.gmra.mrb[0].mxu0 %v1044
      %v1294 = vpop.f32.mrb[0].mxu0
      %v1295 = vadd.f32 %v1066, %v1294
      %v1296 = vpop.f32.mrb[0].mxu0
      %v1297 = vpop.f32.mrb[0].mxu0
      %v1298 = vpop.f32.mrb[0].mxu0
      %1299 = vdwg.mxu0
      %v1300 = vmax.f32 %v1151, 0.0
      %v1301 = vmax.f32 %v1154, 0.0
      %v1302 = vmax.f32 %v1159, 0.0
      %v1303 = vmax.f32 %v1162, 0.0
      %v1304 = vmax.f32 %v1167, 0.0
      %v1305 = vmax.f32 %v1170, 0.0
      %v1306 = vmax.f32 %v1175, 0.0
      %v1307 = vmax.f32 %v1178, 0.0
      %v1308 = vmax.f32 %v1183, 0.0
      %v1309 = vmax.f32 %v1186, 0.0
      %v1310 = vmax.f32 %v1191, 0.0
      %v1311 = vmax.f32 %v1194, 0.0
      %v1312 = vmax.f32 %v1199, 0.0
      %v1313 = vmax.f32 %v1202, 0.0
      %v1314 = vmax.f32 %v1207, 0.0
      %v1315 = vmax.f32 %v1210, 0.0
      %v1316 = vmax.f32 %v1215, 0.0
      %v1317 = vmax.f32 %v1218, 0.0
      %v1318 = vmax.f32 %v1223, 0.0
      %v1319 = vmax.f32 %v1226, 0.0
      %v1320 = vmax.f32 %v1231, 0.0
      %v1321 = vmax.f32 %v1234, 0.0
      %v1322 = vmax.f32 %v1239, 0.0
      %v1323 = vmax.f32 %v1242, 0.0
      %v1324 = vmax.f32 %v1247, 0.0
      %v1325 = vmax.f32 %v1250, 0.0
      %v1326 = vmax.f32 %v1255, 0.0
      %v1327 = vmax.f32 %v1258, 0.0
      %v1328 = vmax.f32 %v1263, 0.0
      %v1329 = vmax.f32 %v1266, 0.0
      %v1330 = vmax.f32 %v1271, 0.0
      %v1331 = vmax.f32 %v1274, 0.0
      %v1332 = vmax.f32 %v1279, 0.0
      %v1333 = vmax.f32 %v1282, 0.0
      %v1334 = vmax.f32 %v1287, 0.0
      %v1335 = vmax.f32 %v1290, 0.0
      %v1336 = vmax.f32 %v1295, 0.0
      %v1337 = vsel %vm949, %v1300, %v1301
      %v1338 = vsel %vm949, %v1301, %v1302
      %v1339 = vsel %vm949, %v1302, %v1303
      %v1340 = vsel %vm949, %v1303, %v1304
      %v1341 = vsel %vm949, %v1304, %v1305
      %v1342 = vsel %vm949, %v1305, %v1306
      %v1343 = vsel %vm949, %v1306, %v1307
      %v1344 = vsel %vm949, %v1307, %v1308
      %v1345 = vsel %vm949, %v1308, %v1309
      %v1346 = vsel %vm949, %v1309, %v1310
      %v1347 = vsel %vm949, %v1310, %v1311
      %v1348 = vsel %vm949, %v1311, %v1312
      %v1349 = vsel %vm949, %v1312, %v1313
      %v1350 = vsel %vm949, %v1313, %v1314
      %v1351 = vsel %vm949, %v1314, %v1315
      %v1352 = vsel %vm949, %v1315, %v1316
      %v1353 = vsel %vm949, %v1316, %v1317
      %v1354 = vsel %vm949, %v1317, %v1318
      %v1355 = vsel %vm949, %v1318, %v1319
      %v1356 = vsel %vm949, %v1319, %v1320
      %v1357 = vsel %vm949, %v1320, %v1321
      %v1358 = vsel %vm949, %v1321, %v1322
      %v1359 = vsel %vm949, %v1322, %v1323
      %v1360 = vsel %vm949, %v1323, %v1324
      %v1361 = vsel %vm949, %v1324, %v1325
      %v1362 = vsel %vm949, %v1325, %v1326
      %v1363 = vsel %vm949, %v1326, %v1327
      %v1364 = vsel %vm949, %v1327, %v1328
      %v1365 = vsel %vm949, %v1328, %v1329
      %v1366 = vsel %vm949, %v1329, %v1330
      %v1367 = vsel %vm949, %v1330, %v1331
      %v1368 = vsel %vm949, %v1331, %v1332
      %v1369 = vsel %vm949, %v1332, %v1333
      %v1370 = vsel %vm949, %v1333, %v1334
      %v1371 = vsel %vm949, %v1334, %v1335
      %v1372 = vsel %vm949, %v1335, %v1336
      %v1373 = vpack.c.bf16 %v1338, %v1337
      %v1374 = vpack.c.bf16 %v1346, %v1345
      %v1375 = vpack.c.bf16 %v1340, %v1339
      %v1376 = vpack.c.bf16 %v1348, %v1347
      %v1377 = vpack.c.bf16 %v1342, %v1341
      %v1378 = vpack.c.bf16 %v1350, %v1349
      %v1379 = vpack.c.bf16 %v1344, %v1343
      %v1380 = vpack.c.bf16 %v1352, %v1351
      %v1381 = vpack.c.bf16 %v1354, %v1353
      %v1382 = vpack.c.bf16 %v1356, %v1355
      %v1383 = vpack.c.bf16 %v1358, %v1357
      %v1384 = vpack.c.bf16 %v1360, %v1359
      %v1385 = vpack.c.bf16 %v1362, %v1361
      %v1386 = vpack.c.bf16 %v1364, %v1363
      %v1387 = vpack.c.bf16 %v1366, %v1365
      %v1388 = vpack.c.bf16 %v1368, %v1367
      %v1389 = vpack.c.bf16 %v1370, %v1369
      %v1390 = vpack.c.bf16 %v1372, %v1371
      %v1391 = vld [vmem:[%s5] sm:$0xf]
      %v1392 = vld [vmem:[%s5 + $0x4] sm:$0xf]
      %v1393 = vld [vmem:[%s5 + $0x8] sm:$0xf]
      %v1394 = vld [vmem:[%s5 + $0xc] sm:$0xf]
      %v1395 = vld [vmem:[%s5 + $0x10] sm:$0xf]
      %v1396 = vld [vmem:[%s5 + $0x14] sm:$0xf]
      %v1397 = vld [vmem:[%s5 + $0x18] sm:$0xf]
      %v1398 = vld [vmem:[%s5 + $0x1c] sm:$0xf]
      %v1399 = vld [vmem:[%s5 + $0x20] sm:$0xf]
      %v1400 = vld [vmem:[%s5 + $0x24] sm:$0xf]
      %v1401 = vld [vmem:[%s5 + $0x28] sm:$0xf]
      %v1402 = vld [vmem:[%s5 + $0x2c] sm:$0xf]
      %v1403 = vld [vmem:[%s5 + $0x30] sm:$0xf]
      %v1404 = vld [vmem:[%s5 + $0x34] sm:$0xf]
      %v1405 = vld [vmem:[%s5 + $0x38] sm:$0xf]
      %v1406 = vld [vmem:[%s5 + $0x3c] sm:$0xf]
      %v1407 = vld [vmem:[%s5 + $0x40] sm:$0xf]
      %v1408 = vld [vmem:[%s5 + $0x44] sm:$0xf]
      %v1409 = vld [vmem:[%s5 + $0x48] sm:$0xf]
      %v1410 = vld [vmem:[%s5 + $0x4c] sm:$0xf]
      %v1411 = vld [vmem:[%s5 + $0x50] sm:$0xf]
      %v1412 = vld [vmem:[%s5 + $0x54] sm:$0xf]
      %v1413 = vld [vmem:[%s5 + $0x58] sm:$0xf]
      %v1414 = vld [vmem:[%s5 + $0x5c] sm:$0xf]
      %v1415 = vld [vmem:[%s5 + $0x60] sm:$0xf]
      %v1416 = vld [vmem:[%s5 + $0x64] sm:$0xf]
      %v1417 = vld [vmem:[%s5 + $0x68] sm:$0xf]
      %v1418 = vld [vmem:[%s5 + $0x6c] sm:$0xf]
      %v1419 = vld [vmem:[%s5 + $0x70] sm:$0xf]
      %v1420 = vld [vmem:[%s5 + $0x74] sm:$0xf]
      %v1421 = vld [vmem:[%s5 + $0x78] sm:$0xf]
      %v1422 = vld [vmem:[%s5 + $0x7c] sm:$0xf]
      %v1423 = vld [vmem:[%s6] sm:$0x1]
      %v1425 = vlaneseq
      %v1426 = vshrl.u32 %v1425, 7
      %v1427 = vsub.s32 0, %v1426
      %v1428 = vrot.slane %v1423, %v1427
      %v1462 = vunpack.c.l.b16 %v1391
      %v1463 = vunpack.c.l.b16 %v1392
      %v1464 = vunpack.c.l.b16 %v1393
      %v1465 = vunpack.c.l.b16 %v1394
      %v1466 = vunpack.c.l.b16 %v1395
      %v1467 = vunpack.c.l.b16 %v1396
      %v1468 = vunpack.c.l.b16 %v1397
      %v1469 = vunpack.c.l.b16 %v1398
      %v1470 = vunpack.c.l.b16 %v1399
      %v1471 = vunpack.c.l.b16 %v1400
      %v1472 = vunpack.c.l.b16 %v1401
      %v1473 = vunpack.c.l.b16 %v1402
      %v1474 = vunpack.c.l.b16 %v1403
      %v1475 = vunpack.c.l.b16 %v1404
      %v1476 = vunpack.c.l.b16 %v1405
      %v1477 = vunpack.c.l.b16 %v1406
      %v1478 = vunpack.c.l.b16 %v1407
      %v1479 = vunpack.c.l.b16 %v1408
      %v1480 = vunpack.c.l.b16 %v1409
      %v1481 = vunpack.c.l.b16 %v1410
      %v1482 = vunpack.c.l.b16 %v1411
      %v1483 = vunpack.c.l.b16 %v1412
      %v1484 = vunpack.c.l.b16 %v1413
      %v1485 = vunpack.c.l.b16 %v1414
      %v1486 = vunpack.c.l.b16 %v1415
      %v1487 = vunpack.c.l.b16 %v1416
      %v1488 = vunpack.c.l.b16 %v1417
      %v1489 = vunpack.c.l.b16 %v1418
      %v1490 = vunpack.c.l.b16 %v1419
      %v1491 = vunpack.c.l.b16 %v1420
      %v1492 = vunpack.c.l.b16 %v1421
      %v1493 = vunpack.c.l.b16 %v1422
      %v1494 = vpack.c.b16 %v1463, %v1462
      %v1495 = vpack.c.b16 %v1465, %v1464
      %v1496 = vpack.c.b16 %v1467, %v1466
      %v1497 = vpack.c.b16 %v1469, %v1468
      %v1498 = vpack.c.b16 %v1471, %v1470
      %v1499 = vpack.c.b16 %v1473, %v1472
      %v1500 = vpack.c.b16 %v1475, %v1474
      %v1501 = vpack.c.b16 %v1477, %v1476
      %v1502 = vpack.c.b16 %v1479, %v1478
      %v1503 = vpack.c.b16 %v1481, %v1480
      %v1504 = vpack.c.b16 %v1483, %v1482
      %v1505 = vpack.c.b16 %v1485, %v1484
      %v1506 = vpack.c.b16 %v1487, %v1486
      %v1507 = vpack.c.b16 %v1489, %v1488
      %v1508 = vpack.c.b16 %v1491, %v1490
      %v1509 = vpack.c.b16 %v1493, %v1492
      %1526 = vmatprep.subr.bf16.mxu0 0
      %1527 = vmatpush1.bf16.msra.mxu0 %v1494
      %1528 = vmatprep.subr.bf16.mxu0 0
      %1529 = vmatpush1.bf16.msra.mxu0 %v1495
      %1530 = vmatprep.subr.bf16.mxu0 0
      %1531 = vmatpush1.bf16.msra.mxu0 %v1496
      %1532 = vmatprep.subr.bf16.mxu0 0
      %1533 = vmatpush1.bf16.msra.mxu0 %v1497
      %1534 = vmatprep.subr.bf16.mxu0 0
      %1535 = vmatpush1.bf16.msra.mxu0 %v1498
      %1536 = vmatprep.subr.bf16.mxu0 0
      %1537 = vmatpush1.bf16.msra.mxu0 %v1499
      %1538 = vmatprep.subr.bf16.mxu0 0
      %1539 = vmatpush1.bf16.msra.mxu0 %v1500
      %1540 = vmatprep.subr.bf16.mxu0 0
      %1541 = vmatpush1.bf16.msra.mxu0 %v1501
      %1542 = vmatprep.subr.bf16.mxu0 0
      %1543 = vmatpush1.bf16.msra.mxu0 %v1502
      %1544 = vmatprep.subr.bf16.mxu0 0
      %1545 = vmatpush1.bf16.msra.mxu0 %v1503
      %1546 = vmatprep.subr.bf16.mxu0 0
      %1547 = vmatpush1.bf16.msra.mxu0 %v1504
      %1548 = vmatprep.subr.bf16.mxu0 0
      %1549 = vmatpush1.bf16.msra.mxu0 %v1505
      %1550 = vmatprep.subr.bf16.mxu0 0
      %1551 = vmatpush1.bf16.msra.mxu0 %v1506
      %1552 = vmatprep.subr.bf16.mxu0 0
      %1553 = vmatpush1.bf16.msra.mxu0 %v1507
      %1554 = vmatprep.subr.bf16.mxu0 0
      %1555 = vmatpush1.bf16.msra.mxu0 %v1508
      %1556 = vmatprep.subr.bf16.mxu0 0
      %1557 = vmatpush1.bf16.msra.mxu0 %v1509
      %1558 = vmatprep.mubr.bf16.mxu0 %v1374
      %1559 = vmatmul.mubr.bf16.gmra.mrb[0].mxu0 %v1373
      %v1560 = vpop.f32.mrb[0].mxu0
      %v1561 = vadd.f32 %v1428, %v1560
      %v1562 = vpop.f32.mrb[0].mxu0
      %v1563 = vpop.f32.mrb[0].mxu0
      %v1564 = vadd.f32 %v1428, %v1563
      %v1565 = vpop.f32.mrb[0].mxu0
      %1566 = vmatprep.mubr.bf16.mxu0 %v1376
      %1567 = vmatmul.mubr.bf16.gmra.mrb[0].mxu0 %v1375
      %v1568 = vpop.f32.mrb[0].mxu0
      %v1569 = vadd.f32 %v1428, %v1568
      %v1570 = vpop.f32.mrb[0].mxu0
      %v1571 = vpop.f32.mrb[0].mxu0
      %v1572 = vadd.f32 %v1428, %v1571
      %v1573 = vpop.f32.mrb[0].mxu0
      %1574 = vmatprep.mubr.bf16.mxu0 %v1378
      %1575 = vmatmul.mubr.bf16.gmra.mrb[0].mxu0 %v1377
      %v1576 = vpop.f32.mrb[0].mxu0
      %v1577 = vpop.f32.mrb[0].mxu0
      %v1578 = vpop.f32.mrb[0].mxu0
      %v1579 = vpop.f32.mrb[0].mxu0
      %1580 = vmatprep.mubr.bf16.mxu0 %v1380
      %1581 = vmatmul.mubr.bf16.gmra.mrb[0].mxu0 %v1379
      %v1582 = vpop.f32.mrb[0].mxu0
      %v1583 = vpop.f32.mrb[0].mxu0
      %v1584 = vpop.f32.mrb[0].mxu0
      %v1585 = vpop.f32.mrb[0].mxu0
      %1586 = vmatprep.mubr.bf16.mxu0 %v1381
      %1587 = vmatmul.mubr.bf16.gmra.mrb[0].mxu0 %v1374
      %v1588 = vpop.f32.mrb[0].mxu0
      %v1589 = vadd.f32 %v1428, %v1588
      %v1590 = vpop.f32.mrb[0].mxu0
      %v1591 = vpop.f32.mrb[0].mxu0
      %v1592 = vadd.f32 %v1428, %v1591
      %v1593 = vpop.f32.mrb[0].mxu0
      %1594 = vmatprep.mubr.bf16.mxu0 %v1382
      %1595 = vmatmul.mubr.bf16.gmra.mrb[0].mxu0 %v1376
      %v1596 = vpop.f32.mrb[0].mxu0
      %v1597 = vadd.f32 %v1428, %v1596
      %v1598 = vpop.f32.mrb[0].mxu0
      %v1599 = vpop.f32.mrb[0].mxu0
      %v1600 = vadd.f32 %v1428, %v1599
      %v1601 = vpop.f32.mrb[0].mxu0
      %1602 = vmatprep.mubr.bf16.mxu0 %v1383
      %1603 = vmatmul.mubr.bf16.gmra.mrb[0].mxu0 %v1378
      %v1604 = vpop.f32.mrb[0].mxu0
      %v1605 = vpop.f32.mrb[0].mxu0
      %v1606 = vpop.f32.mrb[0].mxu0
      %v1607 = vpop.f32.mrb[0].mxu0
      %1608 = vmatprep.mubr.bf16.mxu0 %v1384
      %1609 = vmatmul.mubr.bf16.gmra.mrb[0].mxu0 %v1380
      %v1610 = vpop.f32.mrb[0].mxu0
      %v1611 = vpop.f32.mrb[0].mxu0
      %v1612 = vpop.f32.mrb[0].mxu0
      %v1613 = vpop.f32.mrb[0].mxu0
      %1614 = vmatprep.mubr.bf16.mxu0 %v1385
      %1615 = vmatmul.mubr.bf16.gmra.mrb[0].mxu0 %v1381
      %v1616 = vpop.f32.mrb[0].mxu0
      %v1617 = vadd.f32 %v1428, %v1616
      %v1618 = vpop.f32.mrb[0].mxu0
      %v1619 = vpop.f32.mrb[0].mxu0
      %v1620 = vadd.f32 %v1428, %v1619
      %v1621 = vpop.f32.mrb[0].mxu0
      %1622 = vmatprep.mubr.bf16.mxu0 %v1386
      %1623 = vmatmul.mubr.bf16.gmra.mrb[0].mxu0 %v1382
      %v1624 = vpop.f32.mrb[0].mxu0
      %v1625 = vadd.f32 %v1428, %v1624
      %v1626 = vpop.f32.mrb[0].mxu0
      %v1627 = vpop.f32.mrb[0].mxu0
      %v1628 = vadd.f32 %v1428, %v1627
      %v1629 = vpop.f32.mrb[0].mxu0
      %1630 = vmatprep.mubr.bf16.mxu0 %v1387
      %1631 = vmatmul.mubr.bf16.gmra.mrb[0].mxu0 %v1383
      %v1632 = vpop.f32.mrb[0].mxu0
      %v1633 = vpop.f32.mrb[0].mxu0
      %v1634 = vpop.f32.mrb[0].mxu0
      %v1635 = vpop.f32.mrb[0].mxu0
      %1636 = vmatprep.mubr.bf16.mxu0 %v1388
      %1637 = vmatmul.mubr.bf16.gmra.mrb[0].mxu0 %v1384
      %v1638 = vpop.f32.mrb[0].mxu0
      %v1639 = vpop.f32.mrb[0].mxu0
      %v1640 = vpop.f32.mrb[0].mxu0
      %v1641 = vpop.f32.mrb[0].mxu0
      %1642 = vmatprep.mubr.bf16.mxu0 %v1389
      %1643 = vmatmul.mubr.bf16.gmra.mrb[0].mxu0 %v1385
      %v1644 = vpop.f32.mrb[0].mxu0
      %v1645 = vadd.f32 %v1428, %v1644
      %v1646 = vpop.f32.mrb[0].mxu0
      %v1647 = vpop.f32.mrb[0].mxu0
      %v1648 = vadd.f32 %v1428, %v1647
      %v1649 = vpop.f32.mrb[0].mxu0
      %1650 = vmatprep.mubr.bf16.mxu0 %v1390
      %1651 = vmatmul.mubr.bf16.gmra.mrb[0].mxu0 %v1386
      %v1652 = vpop.f32.mrb[0].mxu0
      %v1653 = vadd.f32 %v1428, %v1652
      %v1654 = vpop.f32.mrb[0].mxu0
      %v1655 = vpop.f32.mrb[0].mxu0
      %v1656 = vadd.f32 %v1428, %v1655
      %v1657 = vpop.f32.mrb[0].mxu0
      %1658 = vdwg.mxu0
      %v1659 = vmax.f32 %v1561, 0.0
      %v1660 = vmax.f32 %v1564, 0.0
      %v1661 = vmax.f32 %v1569, 0.0
      %v1662 = vmax.f32 %v1572, 0.0
      %v1663 = vmax.f32 %v1589, 0.0
      %v1664 = vmax.f32 %v1592, 0.0
      %v1665 = vmax.f32 %v1597, 0.0
      %v1666 = vmax.f32 %v1600, 0.0
      %v1667 = vmax.f32 %v1617, 0.0
      %v1668 = vmax.f32 %v1620, 0.0
      %v1669 = vmax.f32 %v1625, 0.0
      %v1670 = vmax.f32 %v1628, 0.0
      %v1671 = vmax.f32 %v1645, 0.0
      %v1672 = vmax.f32 %v1648, 0.0
      %v1673 = vmax.f32 %v1653, 0.0
      %v1674 = vmax.f32 %v1656, 0.0
      %v1675 = vsel %vm949, %v1659, %v1660
      %v1676 = vsel %vm949, %v1661, %v1662
      %v1677 = vsel %vm949, %v1663, %v1664
      %v1678 = vsel %vm949, %v1665, %v1666
      %v1679 = vsel %vm949, %v1667, %v1668
      %v1680 = vsel %vm949, %v1669, %v1670
      %v1681 = vsel %vm949, %v1671, %v1672
      %v1682 = vsel %vm949, %v1673, %v1674
      %v1683 = vpack.c.bf16 %v1675, %v1675
      %v1684 = vpack.c.bf16 %v1676, %v1676
      %v1685 = vpack.c.bf16 %v1677, %v1677
      %v1686 = vpack.c.bf16 %v1678, %v1678
      %v1687 = vpack.c.bf16 %v1679, %v1679
      %v1688 = vpack.c.bf16 %v1680, %v1680
      %v1689 = vpack.c.bf16 %v1681, %v1681
      %v1690 = vpack.c.bf16 %v1682, %v1682
      %v1691 = vld [vmem:[%s7] sm:$0xf]
      %v1692 = vld [vmem:[%s7 + $0x4] sm:$0xf]
      %v1693 = vld [vmem:[%s7 + $0x8] sm:$0xf]
      %v1694 = vld [vmem:[%s7 + $0xc] sm:$0xf]
      %v1695 = vld [vmem:[%s7 + $0x10] sm:$0xf]
      %v1696 = vld [vmem:[%s7 + $0x14] sm:$0xf]
      %v1697 = vld [vmem:[%s7 + $0x18] sm:$0xf]
      %v1698 = vld [vmem:[%s7 + $0x1c] sm:$0xf]
      %v1699 = vld [vmem:[%s7 + $0x20] sm:$0xf]
      %v1700 = vld [vmem:[%s7 + $0x24] sm:$0xf]
      %v1701 = vld [vmem:[%s7 + $0x28] sm:$0xf]
      %v1702 = vld [vmem:[%s7 + $0x2c] sm:$0xf]
      %v1703 = vld [vmem:[%s7 + $0x30] sm:$0xf]
      %v1704 = vld [vmem:[%s7 + $0x34] sm:$0xf]
      %v1705 = vld [vmem:[%s7 + $0x38] sm:$0xf]
      %v1706 = vld [vmem:[%s7 + $0x3c] sm:$0xf]
      %v1707 = vld [vmem:[%s7 + $0x40] sm:$0xf]
      %v1708 = vld [vmem:[%s7 + $0x44] sm:$0xf]
      %v1709 = vld [vmem:[%s7 + $0x48] sm:$0xf]
      %v1710 = vld [vmem:[%s7 + $0x4c] sm:$0xf]
      %v1711 = vld [vmem:[%s7 + $0x50] sm:$0xf]
      %v1712 = vld [vmem:[%s7 + $0x54] sm:$0xf]
      %v1713 = vld [vmem:[%s7 + $0x58] sm:$0xf]
      %v1714 = vld [vmem:[%s7 + $0x5c] sm:$0xf]
      %v1715 = vld [vmem:[%s7 + $0x60] sm:$0xf]
      %v1716 = vld [vmem:[%s7 + $0x64] sm:$0xf]
      %v1717 = vld [vmem:[%s7 + $0x68] sm:$0xf]
      %v1718 = vld [vmem:[%s7 + $0x6c] sm:$0xf]
      %v1719 = vld [vmem:[%s7 + $0x70] sm:$0xf]
      %v1720 = vld [vmem:[%s7 + $0x74] sm:$0xf]
      %v1721 = vld [vmem:[%s7 + $0x78] sm:$0xf]
      %v1722 = vld [vmem:[%s7 + $0x7c] sm:$0xf]
      %v1723 = vld [vmem:[%s7 + $0x80] sm:$0xf]
      %v1724 = vld [vmem:[%s7 + $0x84] sm:$0xf]
      %v1725 = vld [vmem:[%s7 + $0x88] sm:$0xf]
      %v1726 = vld [vmem:[%s7 + $0x8c] sm:$0xf]
      %v1727 = vld [vmem:[%s7 + $0x90] sm:$0xf]
      %v1728 = vld [vmem:[%s7 + $0x94] sm:$0xf]
      %v1729 = vld [vmem:[%s7 + $0x98] sm:$0xf]
      %v1730 = vld [vmem:[%s7 + $0x9c] sm:$0xf]
      %v1731 = vld [vmem:[%s7 + $0xa0] sm:$0xf]
      %v1732 = vld [vmem:[%s7 + $0xa4] sm:$0xf]
      %v1733 = vld [vmem:[%s7 + $0xa8] sm:$0xf]
      %v1734 = vld [vmem:[%s7 + $0xac] sm:$0xf]
      %v1735 = vld [vmem:[%s7 + $0xb0] sm:$0xf]
      %v1736 = vld [vmem:[%s7 + $0xb4] sm:$0xf]
      %v1737 = vld [vmem:[%s7 + $0xb8] sm:$0xf]
      %v1738 = vld [vmem:[%s7 + $0xbc] sm:$0xf]
      %v1739 = vld [vmem:[%s7 + $0xc0] sm:$0xf]
      %v1740 = vld [vmem:[%s7 + $0xc4] sm:$0xf]
      %v1741 = vld [vmem:[%s7 + $0xc8] sm:$0xf]
      %v1742 = vld [vmem:[%s7 + $0xcc] sm:$0xf]
      %v1743 = vld [vmem:[%s7 + $0xd0] sm:$0xf]
      %v1744 = vld [vmem:[%s7 + $0xd4] sm:$0xf]
      %v1745 = vld [vmem:[%s7 + $0xd8] sm:$0xf]
      %v1746 = vld [vmem:[%s7 + $0xdc] sm:$0xf]
      %v1747 = vld [vmem:[%s7 + $0xe0] sm:$0xf]
      %v1748 = vld [vmem:[%s7 + $0xe4] sm:$0xf]
      %v1749 = vld [vmem:[%s7 + $0xe8] sm:$0xf]
      %v1750 = vld [vmem:[%s7 + $0xec] sm:$0xf]
      %v1751 = vld [vmem:[%s7 + $0xf0] sm:$0xf]
      %v1752 = vld [vmem:[%s7 + $0xf4] sm:$0xf]
      %v1753 = vld [vmem:[%s7 + $0xf8] sm:$0xf]
      %v1754 = vld [vmem:[%s7 + $0xfc] sm:$0xf]
      %v1755 = vld [vmem:[%s7 + $0x100] sm:$0xf]
      %v1756 = vld [vmem:[%s7 + $0x104] sm:$0xf]
      %v1757 = vld [vmem:[%s7 + $0x108] sm:$0xf]
      %v1758 = vld [vmem:[%s7 + $0x10c] sm:$0xf]
      %v1759 = vld [vmem:[%s7 + $0x110] sm:$0xf]
      %v1760 = vld [vmem:[%s7 + $0x114] sm:$0xf]
      %v1761 = vld [vmem:[%s7 + $0x118] sm:$0xf]
      %v1762 = vld [vmem:[%s7 + $0x11c] sm:$0xf]
      %v1763 = vld [vmem:[%s7 + $0x120] sm:$0xf]
      %v1764 = vld [vmem:[%s7 + $0x124] sm:$0xf]
      %v1765 = vld [vmem:[%s7 + $0x128] sm:$0xf]
      %v1766 = vld [vmem:[%s7 + $0x12c] sm:$0xf]
      %v1767 = vld [vmem:[%s7 + $0x130] sm:$0xf]
      %v1768 = vld [vmem:[%s7 + $0x134] sm:$0xf]
      %v1769 = vld [vmem:[%s7 + $0x138] sm:$0xf]
      %v1770 = vld [vmem:[%s7 + $0x13c] sm:$0xf]
      %v1771 = vld [vmem:[%s7 + $0x140] sm:$0xf]
      %v1772 = vld [vmem:[%s7 + $0x144] sm:$0xf]
      %v1773 = vld [vmem:[%s7 + $0x148] sm:$0xf]
      %v1774 = vld [vmem:[%s7 + $0x14c] sm:$0xf]
      %v1775 = vld [vmem:[%s7 + $0x150] sm:$0xf]
      %v1776 = vld [vmem:[%s7 + $0x154] sm:$0xf]
      %v1777 = vld [vmem:[%s7 + $0x158] sm:$0xf]
      %v1778 = vld [vmem:[%s7 + $0x15c] sm:$0xf]
      %v1779 = vld [vmem:[%s7 + $0x160] sm:$0xf]
      %v1780 = vld [vmem:[%s7 + $0x164] sm:$0xf]
      %v1781 = vld [vmem:[%s7 + $0x168] sm:$0xf]
      %v1782 = vld [vmem:[%s7 + $0x16c] sm:$0xf]
      %v1783 = vld [vmem:[%s7 + $0x170] sm:$0xf]
      %v1784 = vld [vmem:[%s7 + $0x174] sm:$0xf]
      %v1785 = vld [vmem:[%s7 + $0x178] sm:$0xf]
      %v1786 = vld [vmem:[%s7 + $0x17c] sm:$0xf]
      %v1787 = vld [vmem:[%s7 + $0x180] sm:$0xf]
      %v1788 = vld [vmem:[%s7 + $0x184] sm:$0xf]
      %v1789 = vld [vmem:[%s7 + $0x188] sm:$0xf]
      %v1790 = vld [vmem:[%s7 + $0x18c] sm:$0xf]
      %v1791 = vld [vmem:[%s7 + $0x190] sm:$0xf]
      %v1792 = vld [vmem:[%s7 + $0x194] sm:$0xf]
      %v1793 = vld [vmem:[%s7 + $0x198] sm:$0xf]
      %v1794 = vld [vmem:[%s7 + $0x19c] sm:$0xf]
      %v1795 = vld [vmem:[%s7 + $0x1a0] sm:$0xf]
      %v1796 = vld [vmem:[%s7 + $0x1a4] sm:$0xf]
      %v1797 = vld [vmem:[%s7 + $0x1a8] sm:$0xf]
      %v1798 = vld [vmem:[%s7 + $0x1ac] sm:$0xf]
      %v1799 = vld [vmem:[%s7 + $0x1b0] sm:$0xf]
      %v1800 = vld [vmem:[%s7 + $0x1b4] sm:$0xf]
      %v1801 = vld [vmem:[%s7 + $0x1b8] sm:$0xf]
      %v1802 = vld [vmem:[%s7 + $0x1bc] sm:$0xf]
      %v1803 = vld [vmem:[%s7 + $0x1c0] sm:$0xf]
      %v1804 = vld [vmem:[%s7 + $0x1c4] sm:$0xf]
      %v1805 = vld [vmem:[%s7 + $0x1c8] sm:$0xf]
      %v1806 = vld [vmem:[%s7 + $0x1cc] sm:$0xf]
      %v1807 = vld [vmem:[%s7 + $0x1d0] sm:$0xf]
      %v1808 = vld [vmem:[%s7 + $0x1d4] sm:$0xf]
      %v1809 = vld [vmem:[%s7 + $0x1d8] sm:$0xf]
      %v1810 = vld [vmem:[%s7 + $0x1dc] sm:$0xf]
      %v1811 = vld [vmem:[%s7 + $0x1e0] sm:$0xf]
      %v1812 = vld [vmem:[%s7 + $0x1e4] sm:$0xf]
      %v1813 = vld [vmem:[%s7 + $0x1e8] sm:$0xf]
      %v1814 = vld [vmem:[%s7 + $0x1ec] sm:$0xf]
      %v1815 = vld [vmem:[%s7 + $0x1f0] sm:$0xf]
      %v1816 = vld [vmem:[%s7 + $0x1f4] sm:$0xf]
      %v1817 = vld [vmem:[%s7 + $0x1f8] sm:$0xf]
      %v1818 = vld [vmem:[%s7 + $0x1fc] sm:$0xf]
      %v1819 = vld [vmem:[%s8] sm:$0x1]
      %v1821 = vlaneseq
      %v1822 = vshrl.u32 %v1821, 7
      %v1823 = vsub.s32 0, %v1822
      %v1824 = vrot.slane %v1819, %v1823
      %v1954 = vunpack.c.l.b16 %v1691
      %v1955 = vunpack.c.l.b16 %v1692
      %v1956 = vunpack.c.l.b16 %v1693
      %v1957 = vunpack.c.l.b16 %v1694
      %v1958 = vunpack.c.l.b16 %v1695
      %v1959 = vunpack.c.l.b16 %v1696
      %v1960 = vunpack.c.l.b16 %v1697
      %v1961 = vunpack.c.l.b16 %v1698
      %v1962 = vunpack.c.l.b16 %v1699
      %v1963 = vunpack.c.l.b16 %v1700
      %v1964 = vunpack.c.l.b16 %v1701
      %v1965 = vunpack.c.l.b16 %v1702
      %v1966 = vunpack.c.l.b16 %v1703
      %v1967 = vunpack.c.l.b16 %v1704
      %v1968 = vunpack.c.l.b16 %v1705
      %v1969 = vunpack.c.l.b16 %v1706
      %v1970 = vunpack.c.l.b16 %v1707
      %v1971 = vunpack.c.l.b16 %v1708
      %v1972 = vunpack.c.l.b16 %v1709
      %v1973 = vunpack.c.l.b16 %v1710
      %v1974 = vunpack.c.l.b16 %v1711
      %v1975 = vunpack.c.l.b16 %v1712
      %v1976 = vunpack.c.l.b16 %v1713
      %v1977 = vunpack.c.l.b16 %v1714
      %v1978 = vunpack.c.l.b16 %v1715
      %v1979 = vunpack.c.l.b16 %v1716
      %v1980 = vunpack.c.l.b16 %v1717
      %v1981 = vunpack.c.l.b16 %v1718
      %v1982 = vunpack.c.l.b16 %v1719
      %v1983 = vunpack.c.l.b16 %v1720
      %v1984 = vunpack.c.l.b16 %v1721
      %v1985 = vunpack.c.l.b16 %v1722
      %v1986 = vunpack.c.l.b16 %v1723
      %v1987 = vunpack.c.l.b16 %v1724
      %v1988 = vunpack.c.l.b16 %v1725
      %v1989 = vunpack.c.l.b16 %v1726
      %v1990 = vunpack.c.l.b16 %v1727
      %v1991 = vunpack.c.l.b16 %v1728
      %v1992 = vunpack.c.l.b16 %v1729
      %v1993 = vunpack.c.l.b16 %v1730
      %v1994 = vunpack.c.l.b16 %v1731
      %v1995 = vunpack.c.l.b16 %v1732
      %v1996 = vunpack.c.l.b16 %v1733
      %v1997 = vunpack.c.l.b16 %v1734
      %v1998 = vunpack.c.l.b16 %v1735
      %v1999 = vunpack.c.l.b16 %v1736
      %v2000 = vunpack.c.l.b16 %v1737
      %v2001 = vunpack.c.l.b16 %v1738
      %v2002 = vunpack.c.l.b16 %v1739
      %v2003 = vunpack.c.l.b16 %v1740
      %v2004 = vunpack.c.l.b16 %v1741
      %v2005 = vunpack.c.l.b16 %v1742
      %v2006 = vunpack.c.l.b16 %v1743
      %v2007 = vunpack.c.l.b16 %v1744
      %v2008 = vunpack.c.l.b16 %v1745
      %v2009 = vunpack.c.l.b16 %v1746
      %v2010 = vunpack.c.l.b16 %v1747
      %v2011 = vunpack.c.l.b16 %v1748
      %v2012 = vunpack.c.l.b16 %v1749
      %v2013 = vunpack.c.l.b16 %v1750
      %v2014 = vunpack.c.l.b16 %v1751
      %v2015 = vunpack.c.l.b16 %v1752
      %v2016 = vunpack.c.l.b16 %v1753
      %v2017 = vunpack.c.l.b16 %v1754
      %v2018 = vunpack.c.l.b16 %v1755
      %v2019 = vunpack.c.l.b16 %v1756
      %v2020 = vunpack.c.l.b16 %v1757
      %v2021 = vunpack.c.l.b16 %v1758
      %v2022 = vunpack.c.l.b16 %v1759
      %v2023 = vunpack.c.l.b16 %v1760
      %v2024 = vunpack.c.l.b16 %v1761
      %v2025 = vunpack.c.l.b16 %v1762
      %v2026 = vunpack.c.l.b16 %v1763
      %v2027 = vunpack.c.l.b16 %v1764
      %v2028 = vunpack.c.l.b16 %v1765
      %v2029 = vunpack.c.l.b16 %v1766
      %v2030 = vunpack.c.l.b16 %v1767
      %v2031 = vunpack.c.l.b16 %v1768
      %v2032 = vunpack.c.l.b16 %v1769
      %v2033 = vunpack.c.l.b16 %v1770
      %v2034 = vunpack.c.l.b16 %v1771
      %v2035 = vunpack.c.l.b16 %v1772
      %v2036 = vunpack.c.l.b16 %v1773
      %v2037 = vunpack.c.l.b16 %v1774
      %v2038 = vunpack.c.l.b16 %v1775
      %v2039 = vunpack.c.l.b16 %v1776
      %v2040 = vunpack.c.l.b16 %v1777
      %v2041 = vunpack.c.l.b16 %v1778
      %v2042 = vunpack.c.l.b16 %v1779
      %v2043 = vunpack.c.l.b16 %v1780
      %v2044 = vunpack.c.l.b16 %v1781
      %v2045 = vunpack.c.l.b16 %v1782
      %v2046 = vunpack.c.l.b16 %v1783
      %v2047 = vunpack.c.l.b16 %v1784
      %v2048 = vunpack.c.l.b16 %v1785
      %v2049 = vunpack.c.l.b16 %v1786
      %v2050 = vunpack.c.l.b16 %v1787
      %v2051 = vunpack.c.l.b16 %v1788
      %v2052 = vunpack.c.l.b16 %v1789
      %v2053 = vunpack.c.l.b16 %v1790
      %v2054 = vunpack.c.l.b16 %v1791
      %v2055 = vunpack.c.l.b16 %v1792
      %v2056 = vunpack.c.l.b16 %v1793
      %v2057 = vunpack.c.l.b16 %v1794
      %v2058 = vunpack.c.l.b16 %v1795
      %v2059 = vunpack.c.l.b16 %v1796
      %v2060 = vunpack.c.l.b16 %v1797
      %v2061 = vunpack.c.l.b16 %v1798
      %v2062 = vunpack.c.l.b16 %v1799
      %v2063 = vunpack.c.l.b16 %v1800
      %v2064 = vunpack.c.l.b16 %v1801
      %v2065 = vunpack.c.l.b16 %v1802
      %v2066 = vunpack.c.l.b16 %v1803
      %v2067 = vunpack.c.l.b16 %v1804
      %v2068 = vunpack.c.l.b16 %v1805
      %v2069 = vunpack.c.l.b16 %v1806
      %v2070 = vunpack.c.l.b16 %v1807
      %v2071 = vunpack.c.l.b16 %v1808
      %v2072 = vunpack.c.l.b16 %v1809
      %v2073 = vunpack.c.l.b16 %v1810
      %v2074 = vunpack.c.l.b16 %v1811
      %v2075 = vunpack.c.l.b16 %v1812
      %v2076 = vunpack.c.l.b16 %v1813
      %v2077 = vunpack.c.l.b16 %v1814
      %v2078 = vunpack.c.l.b16 %v1815
      %v2079 = vunpack.c.l.b16 %v1816
      %v2080 = vunpack.c.l.b16 %v1817
      %v2081 = vunpack.c.l.b16 %v1818
      %v2082 = vpack.c.b16 %v1955, %v1954
      %v2083 = vpack.c.b16 %v1957, %v1956
      %v2084 = vpack.c.b16 %v1959, %v1958
      %v2085 = vpack.c.b16 %v1961, %v1960
      %v2086 = vpack.c.b16 %v1963, %v1962
      %v2087 = vpack.c.b16 %v1965, %v1964
      %v2088 = vpack.c.b16 %v1967, %v1966
      %v2089 = vpack.c.b16 %v1969, %v1968
      %v2090 = vpack.c.b16 %v1971, %v1970
      %v2091 = vpack.c.b16 %v1973, %v1972
      %v2092 = vpack.c.b16 %v1975, %v1974
      %v2093 = vpack.c.b16 %v1977, %v1976
      %v2094 = vpack.c.b16 %v1979, %v1978
      %v2095 = vpack.c.b16 %v1981, %v1980
      %v2096 = vpack.c.b16 %v1983, %v1982
      %v2097 = vpack.c.b16 %v1985, %v1984
      %v2098 = vpack.c.b16 %v1987, %v1986
      %v2099 = vpack.c.b16 %v1989, %v1988
      %v2100 = vpack.c.b16 %v1991, %v1990
      %v2101 = vpack.c.b16 %v1993, %v1992
      %v2102 = vpack.c.b16 %v1995, %v1994
      %v2103 = vpack.c.b16 %v1997, %v1996
      %v2104 = vpack.c.b16 %v1999, %v1998
      %v2105 = vpack.c.b16 %v2001, %v2000
      %v2106 = vpack.c.b16 %v2003, %v2002
      %v2107 = vpack.c.b16 %v2005, %v2004
      %v2108 = vpack.c.b16 %v2007, %v2006
      %v2109 = vpack.c.b16 %v2009, %v2008
      %v2110 = vpack.c.b16 %v2011, %v2010
      %v2111 = vpack.c.b16 %v2013, %v2012
      %v2112 = vpack.c.b16 %v2015, %v2014
      %v2113 = vpack.c.b16 %v2017, %v2016
      %v2114 = vpack.c.b16 %v2019, %v2018
      %v2115 = vpack.c.b16 %v2021, %v2020
      %v2116 = vpack.c.b16 %v2023, %v2022
      %v2117 = vpack.c.b16 %v2025, %v2024
      %v2118 = vpack.c.b16 %v2027, %v2026
      %v2119 = vpack.c.b16 %v2029, %v2028
      %v2120 = vpack.c.b16 %v2031, %v2030
      %v2121 = vpack.c.b16 %v2033, %v2032
      %v2122 = vpack.c.b16 %v2035, %v2034
      %v2123 = vpack.c.b16 %v2037, %v2036
      %v2124 = vpack.c.b16 %v2039, %v2038
      %v2125 = vpack.c.b16 %v2041, %v2040
      %v2126 = vpack.c.b16 %v2043, %v2042
      %v2127 = vpack.c.b16 %v2045, %v2044
      %v2128 = vpack.c.b16 %v2047, %v2046
      %v2129 = vpack.c.b16 %v2049, %v2048
      %v2130 = vpack.c.b16 %v2051, %v2050
      %v2131 = vpack.c.b16 %v2053, %v2052
      %v2132 = vpack.c.b16 %v2055, %v2054
      %v2133 = vpack.c.b16 %v2057, %v2056
      %v2134 = vpack.c.b16 %v2059, %v2058
      %v2135 = vpack.c.b16 %v2061, %v2060
      %v2136 = vpack.c.b16 %v2063, %v2062
      %v2137 = vpack.c.b16 %v2065, %v2064
      %v2138 = vpack.c.b16 %v2067, %v2066
      %v2139 = vpack.c.b16 %v2069, %v2068
      %v2140 = vpack.c.b16 %v2071, %v2070
      %v2141 = vpack.c.b16 %v2073, %v2072
      %v2142 = vpack.c.b16 %v2075, %v2074
      %v2143 = vpack.c.b16 %v2077, %v2076
      %v2144 = vpack.c.b16 %v2079, %v2078
      %v2145 = vpack.c.b16 %v2081, %v2080
      %2210 = vmatprep.subr.bf16.mxu0 0
      %2211 = vmatpush1.bf16.msra.mxu0 %v2082
      %2212 = vmatprep.subr.bf16.mxu0 0
      %2213 = vmatpush1.bf16.msra.mxu0 %v2083
      %2214 = vmatprep.subr.bf16.mxu0 0
      %2215 = vmatpush1.bf16.msra.mxu0 %v2084
      %2216 = vmatprep.subr.bf16.mxu0 0
      %2217 = vmatpush1.bf16.msra.mxu0 %v2085
      %2218 = vmatprep.subr.bf16.mxu0 0
      %2219 = vmatpush1.bf16.msra.mxu0 %v2086
      %2220 = vmatprep.subr.bf16.mxu0 0
      %2221 = vmatpush1.bf16.msra.mxu0 %v2087
      %2222 = vmatprep.subr.bf16.mxu0 0
      %2223 = vmatpush1.bf16.msra.mxu0 %v2088
      %2224 = vmatprep.subr.bf16.mxu0 0
      %2225 = vmatpush1.bf16.msra.mxu0 %v2089
      %2226 = vmatprep.subr.bf16.mxu0 0
      %2227 = vmatpush1.bf16.msra.mxu0 %v2090
      %2228 = vmatprep.subr.bf16.mxu0 0
      %2229 = vmatpush1.bf16.msra.mxu0 %v2091
      %2230 = vmatprep.subr.bf16.mxu0 0
      %2231 = vmatpush1.bf16.msra.mxu0 %v2092
      %2232 = vmatprep.subr.bf16.mxu0 0
      %2233 = vmatpush1.bf16.msra.mxu0 %v2093
      %2234 = vmatprep.subr.bf16.mxu0 0
      %2235 = vmatpush1.bf16.msra.mxu0 %v2094
      %2236 = vmatprep.subr.bf16.mxu0 0
      %2237 = vmatpush1.bf16.msra.mxu0 %v2095
      %2238 = vmatprep.subr.bf16.mxu0 0
      %2239 = vmatpush1.bf16.msra.mxu0 %v2096
      %2240 = vmatprep.subr.bf16.mxu0 0
      %2241 = vmatpush1.bf16.msra.mxu0 %v2097
      %2242 = vmatprep.mubr.bf16.mxu0 %v1684
      %2243 = vmatmul.mubr.bf16.gmra.mrb[0].mxu0 %v1683
      %v2244 = vpop.f32.mrb[0].mxu0
      %v2245 = vadd.f32 %v1824, %v2244
      %v2246 = vpop.f32.mrb[0].mxu0
      %v2247 = vpop.f32.mrb[0].mxu0
      %v2248 = vpop.f32.mrb[0].mxu0
      %2249 = vdwg.mxu0
      %2250 = vmatprep.subr.bf16.mxu0 0
      %2251 = vmatpush1.bf16.msra.mxu0 %v2098
      %2252 = vmatprep.subr.bf16.mxu0 0
      %2253 = vmatpush1.bf16.msra.mxu0 %v2099
      %2254 = vmatprep.subr.bf16.mxu0 0
      %2255 = vmatpush1.bf16.msra.mxu0 %v2100
      %2256 = vmatprep.subr.bf16.mxu0 0
      %2257 = vmatpush1.bf16.msra.mxu0 %v2101
      %2258 = vmatprep.subr.bf16.mxu0 0
      %2259 = vmatpush1.bf16.msra.mxu0 %v2102
      %2260 = vmatprep.subr.bf16.mxu0 0
      %2261 = vmatpush1.bf16.msra.mxu0 %v2103
      %2262 = vmatprep.subr.bf16.mxu0 0
      %2263 = vmatpush1.bf16.msra.mxu0 %v2104
      %2264 = vmatprep.subr.bf16.mxu0 0
      %2265 = vmatpush1.bf16.msra.mxu0 %v2105
      %2266 = vmatprep.subr.bf16.mxu0 0
      %2267 = vmatpush1.bf16.msra.mxu0 %v2106
      %2268 = vmatprep.subr.bf16.mxu0 0
      %2269 = vmatpush1.bf16.msra.mxu0 %v2107
      %2270 = vmatprep.subr.bf16.mxu0 0
      %2271 = vmatpush1.bf16.msra.mxu0 %v2108
      %2272 = vmatprep.subr.bf16.mxu0 0
      %2273 = vmatpush1.bf16.msra.mxu0 %v2109
      %2274 = vmatprep.subr.bf16.mxu0 0
      %2275 = vmatpush1.bf16.msra.mxu0 %v2110
      %2276 = vmatprep.subr.bf16.mxu0 0
      %2277 = vmatpush1.bf16.msra.mxu0 %v2111
      %2278 = vmatprep.subr.bf16.mxu0 0
      %2279 = vmatpush1.bf16.msra.mxu0 %v2112
      %2280 = vmatprep.subr.bf16.mxu0 0
      %2281 = vmatpush1.bf16.msra.mxu0 %v2113
      %2282 = vmatprep.mubr.bf16.mxu0 %v1686
      %2283 = vmatmul.mubr.bf16.gmra.mrb[0].mxu0 %v1685
      %v2284 = vpop.f32.mrb[0].mxu0
      %v2285 = vadd.f32 %v2245, %v2284
      %v2286 = vpop.f32.mrb[0].mxu0
      %v2287 = vpop.f32.mrb[0].mxu0
      %v2288 = vpop.f32.mrb[0].mxu0
      %2289 = vdwg.mxu0
      %2290 = vmatprep.subr.bf16.mxu0 0
      %2291 = vmatpush1.bf16.msra.mxu0 %v2114
      %2292 = vmatprep.subr.bf16.mxu0 0
      %2293 = vmatpush1.bf16.msra.mxu0 %v2115
      %2294 = vmatprep.subr.bf16.mxu0 0
      %2295 = vmatpush1.bf16.msra.mxu0 %v2116
      %2296 = vmatprep.subr.bf16.mxu0 0
      %2297 = vmatpush1.bf16.msra.mxu0 %v2117
      %2298 = vmatprep.subr.bf16.mxu0 0
      %2299 = vmatpush1.bf16.msra.mxu0 %v2118
      %2300 = vmatprep.subr.bf16.mxu0 0
      %2301 = vmatpush1.bf16.msra.mxu0 %v2119
      %2302 = vmatprep.subr.bf16.mxu0 0
      %2303 = vmatpush1.bf16.msra.mxu0 %v2120
      %2304 = vmatprep.subr.bf16.mxu0 0
      %2305 = vmatpush1.bf16.msra.mxu0 %v2121
      %2306 = vmatprep.subr.bf16.mxu0 0
      %2307 = vmatpush1.bf16.msra.mxu0 %v2122
      %2308 = vmatprep.subr.bf16.mxu0 0
      %2309 = vmatpush1.bf16.msra.mxu0 %v2123
      %2310 = vmatprep.subr.bf16.mxu0 0
      %2311 = vmatpush1.bf16.msra.mxu0 %v2124
      %2312 = vmatprep.subr.bf16.mxu0 0
      %2313 = vmatpush1.bf16.msra.mxu0 %v2125
      %2314 = vmatprep.subr.bf16.mxu0 0
      %2315 = vmatpush1.bf16.msra.mxu0 %v2126
      %2316 = vmatprep.subr.bf16.mxu0 0
      %2317 = vmatpush1.bf16.msra.mxu0 %v2127
      %2318 = vmatprep.subr.bf16.mxu0 0
      %2319 = vmatpush1.bf16.msra.mxu0 %v2128
      %2320 = vmatprep.subr.bf16.mxu0 0
      %2321 = vmatpush1.bf16.msra.mxu0 %v2129
      %2322 = vmatprep.mubr.bf16.mxu0 %v1688
      %2323 = vmatmul.mubr.bf16.gmra.mrb[0].mxu0 %v1687
      %v2324 = vpop.f32.mrb[0].mxu0
      %v2325 = vadd.f32 %v2285, %v2324
      %v2326 = vpop.f32.mrb[0].mxu0
      %v2327 = vpop.f32.mrb[0].mxu0
      %v2328 = vpop.f32.mrb[0].mxu0
      %2329 = vdwg.mxu0
      %2330 = vmatprep.subr.bf16.mxu0 0
      %2331 = vmatpush1.bf16.msra.mxu0 %v2130
      %2332 = vmatprep.subr.bf16.mxu0 0
      %2333 = vmatpush1.bf16.msra.mxu0 %v2131
      %2334 = vmatprep.subr.bf16.mxu0 0
      %2335 = vmatpush1.bf16.msra.mxu0 %v2132
      %2336 = vmatprep.subr.bf16.mxu0 0
      %2337 = vmatpush1.bf16.msra.mxu0 %v2133
      %2338 = vmatprep.subr.bf16.mxu0 0
      %2339 = vmatpush1.bf16.msra.mxu0 %v2134
      %2340 = vmatprep.subr.bf16.mxu0 0
      %2341 = vmatpush1.bf16.msra.mxu0 %v2135
      %2342 = vmatprep.subr.bf16.mxu0 0
      %2343 = vmatpush1.bf16.msra.mxu0 %v2136
      %2344 = vmatprep.subr.bf16.mxu0 0
      %2345 = vmatpush1.bf16.msra.mxu0 %v2137
      %2346 = vmatprep.subr.bf16.mxu0 0
      %2347 = vmatpush1.bf16.msra.mxu0 %v2138
      %2348 = vmatprep.subr.bf16.mxu0 0
      %2349 = vmatpush1.bf16.msra.mxu0 %v2139
      %2350 = vmatprep.subr.bf16.mxu0 0
      %2351 = vmatpush1.bf16.msra.mxu0 %v2140
      %2352 = vmatprep.subr.bf16.mxu0 0
      %2353 = vmatpush1.bf16.msra.mxu0 %v2141
      %2354 = vmatprep.subr.bf16.mxu0 0
      %2355 = vmatpush1.bf16.msra.mxu0 %v2142
      %2356 = vmatprep.subr.bf16.mxu0 0
      %2357 = vmatpush1.bf16.msra.mxu0 %v2143
      %2358 = vmatprep.subr.bf16.mxu0 0
      %2359 = vmatpush1.bf16.msra.mxu0 %v2144
      %2360 = vmatprep.subr.bf16.mxu0 0
      %2361 = vmatpush1.bf16.msra.mxu0 %v2145
      %2362 = vmatprep.mubr.bf16.mxu0 %v1690
      %2363 = vmatmul.mubr.bf16.gmra.mrb[0].mxu0 %v1689
      %v2364 = vpop.f32.mrb[0].mxu0
      %v2365 = vadd.f32 %v2325, %v2364
      %v2366 = vpop.f32.mrb[0].mxu0
      %v2367 = vpop.f32.mrb[0].mxu0
      %v2368 = vpop.f32.mrb[0].mxu0
      %2369 = vdwg.mxu0
      %v2370 = vmax.f32 %v2365, 0.0
      %v2371 = vpack.c.bf16 %v2370, %v2370
      %v2372 = vld [vmem:[%s9] sm:$0xf]
      %v2373 = vld [vmem:[%s9 + $0x4] sm:$0xf]
      %v2374 = vld [vmem:[%s9 + $0x8] sm:$0xf]
      %v2375 = vld [vmem:[%s9 + $0xc] sm:$0xf]
      %v2376 = vld [vmem:[%s9 + $0x10] sm:$0xf]
      %v2377 = vld [vmem:[%s9 + $0x14] sm:$0xf]
      %v2378 = vld [vmem:[%s9 + $0x18] sm:$0xf]
      %v2379 = vld [vmem:[%s9 + $0x1c] sm:$0xf]
      %v2380 = vld [vmem:[%s9 + $0x20] sm:$0xf]
      %v2381 = vld [vmem:[%s9 + $0x24] sm:$0xf]
      %v2382 = vld [vmem:[%s9 + $0x28] sm:$0xf]
      %v2383 = vld [vmem:[%s9 + $0x2c] sm:$0xf]
      %v2384 = vld [vmem:[%s9 + $0x30] sm:$0xf]
      %v2385 = vld [vmem:[%s9 + $0x34] sm:$0xf]
      %v2386 = vld [vmem:[%s9 + $0x38] sm:$0xf]
      %v2387 = vld [vmem:[%s9 + $0x3c] sm:$0xf]
      %v2388 = vld [vmem:[%s10] sm:$0x1]
      %v2390 = vlaneseq
      %v2391 = vshrl.u32 %v2390, 7
      %v2392 = vsub.s32 0, %v2391
      %v2393 = vrot.slane %v2388, %v2392
      %v2411 = vunpack.c.l.b16 %v2372
      %v2412 = vunpack.c.l.b16 %v2373
      %v2413 = vunpack.c.l.b16 %v2374
      %v2414 = vunpack.c.l.b16 %v2375
      %v2415 = vunpack.c.l.b16 %v2376
      %v2416 = vunpack.c.l.b16 %v2377
      %v2417 = vunpack.c.l.b16 %v2378
      %v2418 = vunpack.c.l.b16 %v2379
      %v2419 = vunpack.c.l.b16 %v2380
      %v2420 = vunpack.c.l.b16 %v2381
      %v2421 = vunpack.c.l.b16 %v2382
      %v2422 = vunpack.c.l.b16 %v2383
      %v2423 = vunpack.c.l.b16 %v2384
      %v2424 = vunpack.c.l.b16 %v2385
      %v2425 = vunpack.c.l.b16 %v2386
      %v2426 = vunpack.c.l.b16 %v2387
      %v2427 = vpack.c.b16 %v2412, %v2411
      %v2428 = vpack.c.b16 %v2414, %v2413
      %v2429 = vpack.c.b16 %v2416, %v2415
      %v2430 = vpack.c.b16 %v2418, %v2417
      %v2431 = vpack.c.b16 %v2420, %v2419
      %v2432 = vpack.c.b16 %v2422, %v2421
      %v2433 = vpack.c.b16 %v2424, %v2423
      %v2434 = vpack.c.b16 %v2426, %v2425
      %2443 = vmatprep.subr.bf16.mxu0 0
      %2444 = vmatpush1.bf16.msra.mxu0 %v2427
      %2445 = vmatprep.subr.bf16.mxu0 0
      %2446 = vmatpush1.bf16.msra.mxu0 %v2428
      %2447 = vmatprep.subr.bf16.mxu0 0
      %2448 = vmatpush1.bf16.msra.mxu0 %v2429
      %2449 = vmatprep.subr.bf16.mxu0 0
      %2450 = vmatpush1.bf16.msra.mxu0 %v2430
      %2451 = vmatprep.subr.bf16.mxu0 0
      %2452 = vmatpush1.bf16.msra.mxu0 %v2431
      %2453 = vmatprep.subr.bf16.mxu0 0
      %2454 = vmatpush1.bf16.msra.mxu0 %v2432
      %2455 = vmatprep.subr.bf16.mxu0 0
      %2456 = vmatpush1.bf16.msra.mxu0 %v2433
      %2457 = vmatprep.subr.bf16.mxu0 0
      %2458 = vmatpush1.bf16.msra.mxu0 %v2434
      %2459 = vmatprep.subr.bf16.mxu0 0
      %2460 = vmatpush1.bf16.msra.mxu0 0
      %2461 = vmatprep.subr.bf16.mxu0 0
      %2462 = vmatpush1.bf16.msra.mxu0 0
      %2463 = vmatprep.subr.bf16.mxu0 0
      %2464 = vmatpush1.bf16.msra.mxu0 0
      %2465 = vmatprep.subr.bf16.mxu0 0
      %2466 = vmatpush1.bf16.msra.mxu0 0
      %2467 = vmatprep.subr.bf16.mxu0 0
      %2468 = vmatpush1.bf16.msra.mxu0 0
      %2469 = vmatprep.subr.bf16.mxu0 0
      %2470 = vmatpush1.bf16.msra.mxu0 0
      %2471 = vmatprep.subr.bf16.mxu0 0
      %2472 = vmatpush1.bf16.msra.mxu0 0
      %2473 = vmatprep.subr.bf16.mxu0 0
      %2474 = vmatpush1.bf16.msra.mxu0 0
      %2475 = vmatprep.mubr.bf16.mxu0 0
      %2476 = vmatmul.mubr.bf16.gmra.mrb[0].mxu0 %v2371
      %v2477 = vpop.f32.mrb[0].mxu0
      %v2478 = vadd.f32 %v2393, %v2477
      %v2479 = vpop.f32.mrb[0].mxu0
      %v2480 = vpop.f32.mrb[0].mxu0
      %v2481 = vpop.f32.mrb[0].mxu0
      %2482 = vdwg.mxu0
      %2483 = vst [vmem:[%s384] sm:$0xff] %v2478
      %p2484 = scmp.lt.s32.totalorder %s22, 1
      %s2485 = scalar_select %p2484, %s22, 1
      %s2486 = smul.addr %s2485, 8
      %s2487 = scalar_lea.vmem %s11, %s2486
      // Predicated region
      $region65: #{pursuit_forward.1} parent=63 // pred_check
        %p2488 = pneg %p276
      $region66: #{pursuit_forward.1} parent=63 // pred_check_branch
        %2490 = sbr.rel (%p2488) target = $region68
      $region67: #{pursuit_forward.1} parent=63 // pred_region
        _
      $region68: #{pursuit_forward.1} parent=63 // pred_fallthru
        _
    $region64: #{pursuit_forward.1} parent=5 // pred_fallthru
      _
    %p2491 = scmp.le.s32.totalorder 2, %s17
    // Predicated region
    $region69: #{pursuit_forward.1} parent=5 // pred_check
      %p2492 = pneg %p2491
    $region70: #{pursuit_forward.1} parent=5 // pred_check_branch
      %2494 = sbr.rel (%p2492) target = $region72
    $region71: #{pursuit_forward.1} parent=5 // pred_region
      %s2495 = ssub.s32 %s17, 2
      // Predicated region
      $region73: #{pursuit_forward.1} parent=71 // pred_check
        %p2496 = pneg %p282
      $region74: #{pursuit_forward.1} parent=71 // pred_check_branch
        %2498 = sbr.rel (%p2496) target = $region76
      $region75: #{pursuit_forward.1} parent=71 // pred_region
        %p2499 = scmp.lt.s32.totalorder %s23, 1
        %s2500 = scalar_select %p2499, %s23, 1
        %s2501 = smul.addr %s2500, 8
        %s2502 = scalar_lea.vmem %s11, %s2501
      $region76: #{pursuit_forward.1} parent=71 // pred_fallthru
        _
    $region72: #{pursuit_forward.1} parent=5 // pred_fallthru
      _
  $region6: #{pursuit_forward.1} parent=0 // loop_footer
    %s21 = sadd.s32 1, %s17
  $region7: #{pursuit_forward.1} parent=0 // loop_footer_branch
    %16 = sbr.rel target = $region3
  $region8: #{pursuit_forward.1} parent=0 // loop_exit
    _

</llo_original>
